<compile_context>
chip_gen: v5e
topology: v5e:2x2
jax: 0.10.0
libtpu: 0.0.40
codegen_flags: <defaults>
</compile_context>

<pallas_src>
import numpy as np
import jax
import jax.numpy as jnp
from jax import lax
from jax.experimental import pallas as pl
from jax.experimental.pallas import tpu as pltpu

CHANNELS = 2048   # hard-coded by the module (nn.Parameter(torch.full([2048], p_k)))
SPATIAL = 49      # hard-coded by the view([-1, 2048, 49])
MAX_TB = 8        # batch rows per grid step (block <= 6.4 MB double-buffered)


def _int_pow(x, n: int):
    """x**n for a small static positive int, via plain multiplies (VPU only)."""
    assert n >= 1
    result, base = None, x
    while n:
        if n & 1:
            result = base if result is None else result * base
        n >>= 1
        if n:
            base = base * base
    return result


def _make_kernel(tb, b_true, b_pad, int_p):
    guard_tail = (b_pad != b_true)

    def kernel(x_ref, p_ref, ip_ref, o_ref, m_scr):
        # x_ref : (tb, SPATIAL, c_tile)  channels-last features (f32 or bf16)
        # p_ref : (1, c_tile)            per-channel p_k, lane-dense (f32)
        # ip_ref: (1, c_tile)            per-channel 1/p_k, lane-dense (f32)
        # o_ref : (tb, c_tile)           lane-dense f32 output block
        # m_scr : (tb, c_tile)           f32 scratch holding per-image means
        p_row = p_ref[...] if int_p is None else None
        # Spatial-mean weights: 1/49 folded into the MXU reduction.
        w = jnp.full((1, SPATIAL), 1.0 / SPATIAL, dtype=jnp.float32)

        def image_body(b, carry):
            def compute():
                xb = x_ref[b].astype(jnp.float32)        # (SPATIAL, c_tile), lanes = channels
                if int_p is not None:
                    xp = _int_pow(xb, int_p)             # VPU multiplies, no EUP
                else:
                    xp = jnp.power(xb, p_row)            # exp/log on EUP, lane-dense vregs
                # (1,49) @ (49,c_tile) -> (1,c_tile): canonical MXU form, no transpose.
                m = jnp.dot(w, xp, preferred_element_type=jnp.float32)
                m_scr[pl.ds(b, 1), :] = m

            if guard_tail:
                # Skip the ones-padded tail rows; their scratch rows stay stale
                # and the corresponding outputs are sliced off in the wrapper.
                @pl.when(pl.program_id(0) * tb + b < b_true)
                def _():
                    compute()
            else:
                compute()
            return carry

        lax.fori_loop(0, tb, image_body, 0, unroll=2)

        # One dense pow + one dense store over the whole (tb, c_tile) tile.
        o_ref[...] = jnp.power(m_scr[...], ip_ref[...])

    return kernel


def global_descriptor(x, p_k, *, channels_last=False, allow_integer_fast_path=True):
    """GeM pooling: (mean_spatial x**p)**(1/p) per channel. Returns (B, 2048) f32.

    x: reshapeable to (-1, 2048, 49) (e.g. NCHW (B, 2048, 7, 7)); with
       channels_last=True, reshapeable to (-1, 49, 2048) (NHWC producer, no relayout).
    p_k: (2048,) per-channel exponent (or a scalar, broadcast).
    """
    x = jnp.asarray(x)
    if x.dtype != jnp.bfloat16:          # keep bf16 features as-is (upcast in-kernel)
        x = x.astype(jnp.float32)

    if channels_last:
        x = x.reshape(-1, SPATIAL, CHANNELS)
    else:
        # Channels-on-lanes relayout so the dominant elementwise pow is lane-dense.
        x = x.reshape(-1, CHANNELS, SPATIAL)
        x = jnp.swapaxes(x, 1, 2)                       # (B, 49, 2048)
    b_true = x.shape[0]

    p_f32 = jnp.broadcast_to(
        jnp.asarray(p_k, jnp.float32).reshape(-1), (CHANNELS,))
    p_row = p_f32.reshape(1, CHANNELS)                  # lane-dense p
    ip_row = (1.0 / p_f32).reshape(1, CHANNELS)         # lane-dense 1/p (precomputed)

    # Integer-exponent fast path (constructor uses torch.full([2048], p_k)).
    int_p = None
    if allow_integer_fast_path:
        try:
            p_np = np.asarray(p_f32)                    # fails if traced -> generic path
            v = float(p_np[0])
            if np.all(p_np == p_np[0]) and v.is_integer() and 1 <= v <= 8:
                int_p = int(v)
        except Exception:
            int_p = None

    # Tiling: split channels only when batch can't provide >=2 grid steps
    # (v7x dual-TC needs parallel steps; single-TC v5e/v6e just take one big step).
    tb = b_true if b_true <= MAX_TB else MAX_TB
    c_tile = CHANNELS if b_true >= 2 else CHANNELS // 2

    b_pad = ((b_true + tb - 1) // tb) * tb
    if b_pad != b_true:                  # pad with ones; padded rows are skipped in-kernel
        pad = jnp.ones((b_pad - b_true,) + x.shape[1:], x.dtype)
        x = jnp.concatenate([x, pad], axis=0)

    grid = (b_pad // tb, CHANNELS // c_tile)
    kernel = _make_kernel(tb, b_true, b_pad, int_p)

    n_elem = b_pad * CHANNELS * SPATIAL
    if int_p is None:
        flops, transc = 3 * n_elem, 2 * n_elem + 2 * b_pad * CHANNELS
    else:
        flops, transc = (int_p + 2) * n_elem, 2 * b_pad * CHANNELS

    out = pl.pallas_call(
        kernel,
        out_shape=jax.ShapeDtypeStruct((b_pad, CHANNELS), jnp.float32),
        grid_spec=pltpu.PrefetchScalarGridSpec(
            num_scalar_prefetch=0,
            grid=grid,
            in_specs=[
                pl.BlockSpec((tb, SPATIAL, c_tile), lambda i, c: (i, 0, c)),
                pl.BlockSpec((1, c_tile), lambda i, c: (0, c)),
                pl.BlockSpec((1, c_tile), lambda i, c: (0, c)),
            ],
            out_specs=pl.BlockSpec((tb, c_tile), lambda i, c: (i, c)),
            scratch_shapes=[pltpu.VMEM((tb, c_tile), jnp.float32)],
        ),
        compiler_params=pltpu.CompilerParams(
            dimension_semantics=("parallel", "parallel")),
        cost_estimate=pl.CostEstimate(
            flops=flops,
            transcendentals=transc,
            bytes_accessed=(n_elem * x.dtype.itemsize
                            + b_pad * CHANNELS * 4 + CHANNELS * 8)),
    )(x, p_row, ip_row)
    return out[:b_true]


# TODO(synk): the module's custom_grad / autograd backward is dead code in the
# reference and is not implemented here (forward pass only).


if __name__ == "__main__":
    key = jax.random.PRNGKey(0)

    # Input consistent with the module's hard-coded view: (B, 2048, 7, 7) NCHW,
    # strictly positive (ReLU-style features) so pow is well defined.
    B = 2
    x = jax.random.uniform(key, (B, CHANNELS, 7, 7), jnp.float32,
                           minval=0.1, maxval=2.0)

    def reference(xx, pp):
        xr = xx.reshape(-1, CHANNELS, SPATIAL).astype(jnp.float32)
        return jnp.power(jnp.mean(jnp.power(xr, pp[None, :, None]), axis=2),
                         1.0 / pp[None, :])

    # 1) Constructor default p_k = full([2048], 3.0) -> integer VPU fast path.
    p_uniform = jnp.full((CHANNELS,), 3.0, jnp.float32)
    y = jax.block_until_ready(global_descriptor(x, p_uniform))
    assert y.shape == (B, CHANNELS)
    assert bool(jnp.allclose(y, reference(x, p_uniform), rtol=2e-3, atol=1e-4)), \
        "fast-path mismatch vs reference"

    # 2) Non-uniform ("trained") p_k -> generic exp/log path; B == 1 also
    #    exercises the channel-split tiling branch.
    p_var = jnp.linspace(2.5, 3.5, CHANNELS, dtype=jnp.float32)
    y2 = jax.block_until_ready(global_descriptor(x[:1], p_var))
    assert y2.shape == (1, CHANNELS)
    assert bool(jnp.allclose(y2, reference(x[:1], p_var), rtol=2e-3, atol=1e-4)), \
        "generic-path mismatch vs reference"

    print("KERNEL_OK")
</pallas_src>

<mosaic_0001>
module attributes {stable_mosaic.version = 11 : i64} {
  func.func @kernel(%arg0: i32, %arg1: i32, %arg2: memref<2x49x2048xf32, #tpu.memory_space<vmem>>, %arg3: memref<1x2048xf32, #tpu.memory_space<vmem>>, %arg4: memref<1x2048xf32, #tpu.memory_space<vmem>>, %arg5: memref<2x2048xf32, #tpu.memory_space<vmem>>, %arg6: memref<2x2048xf32, #tpu.memory_space<vmem>>) attributes {dimension_semantics = [#tpu.dimension_semantics<parallel>, #tpu.dimension_semantics<parallel>], iteration_bounds = array<i64: 1, 1>, scalar_prefetch = 0 : i64, scratch_operands = 1 : i64, tpu.core_type = #tpu.core_type<tc>, window_params = [{transform_indices = @transform_0, window_bounds = array<i64: 2, 49, 2048>}, {transform_indices = @transform_1, window_bounds = array<i64: 1, 2048>}, {transform_indices = @transform_2, window_bounds = array<i64: 1, 2048>}, {transform_indices = @transform_3, window_bounds = array<i64: 2, 2048>}]} {
    %cst = arith.constant 0.0204081628 : f32
    %0 = vector.broadcast %cst : f32 to vector<1x49xf32>
    %c0_i32 = arith.constant 0 : i32
    %1 = arith.index_cast %c0_i32 : i32 to index
    %c0 = arith.constant 0 : index
    %c0_0 = arith.constant 0 : index
    %2 = vector.load %arg2[%1, %c0, %c0_0] : memref<2x49x2048xf32, #tpu.memory_space<vmem>>, vector<1x49x2048xf32>
    %3 = vector.shape_cast %2 : vector<1x49x2048xf32> to vector<49x2048xf32>
    %4 = arith.mulf %3, %3 : vector<49x2048xf32>
    %5 = arith.mulf %3, %4 : vector<49x2048xf32>
    %cst_1 = arith.constant dense<0.000000e+00> : vector<1x2048xf32>
    %6 = tpu.matmul %0, %5, %cst_1 {dimension_numbers = #tpu.dot_dimension_numbers<[1], [0], [0], [1], [0, 0, 1, 1], [], []>} : vector<1x49xf32>, vector<49x2048xf32>, vector<1x2048xf32> -> vector<1x2048xf32>
    %7 = arith.index_cast %c0_i32 : i32 to index
    %c0_2 = arith.constant 0 : index
    %8 = vector.load %arg6[%7, %c0_2] : memref<2x2048xf32, #tpu.memory_space<vmem>>, vector<1x2048xf32>
    tpu.vector_store %arg6[%7, %c0_2], %6 {strides = array<i32>} : memref<2x2048xf32, #tpu.memory_space<vmem>>, vector<1x2048xf32>,
    %c1_i32 = arith.constant 1 : i32
    %9 = arith.index_cast %c1_i32 : i32 to index
    %c0_3 = arith.constant 0 : index
    %c0_4 = arith.constant 0 : index
    %10 = vector.load %arg2[%9, %c0_3, %c0_4] : memref<2x49x2048xf32, #tpu.memory_space<vmem>>, vector<1x49x2048xf32>
    %11 = vector.shape_cast %10 : vector<1x49x2048xf32> to vector<49x2048xf32>
    %12 = arith.mulf %11, %11 : vector<49x2048xf32>
    %13 = arith.mulf %11, %12 : vector<49x2048xf32>
    %cst_5 = arith.constant dense<0.000000e+00> : vector<1x2048xf32>
    %14 = tpu.matmul %0, %13, %cst_5 {dimension_numbers = #tpu.dot_dimension_numbers<[1], [0], [0], [1], [0, 0, 1, 1], [], []>} : vector<1x49xf32>, vector<49x2048xf32>, vector<1x2048xf32> -> vector<1x2048xf32>
    %15 = arith.index_cast %c1_i32 : i32 to index
    %c0_6 = arith.constant 0 : index
    %16 = vector.load %arg6[%15, %c0_6] : memref<2x2048xf32, #tpu.memory_space<vmem>>, vector<1x2048xf32>
    tpu.vector_store %arg6[%15, %c0_6], %14 {strides = array<i32>} : memref<2x2048xf32, #tpu.memory_space<vmem>>, vector<1x2048xf32>,
    %c2_i32 = arith.constant 2 : i32
    %c0_7 = arith.constant 0 : index
    %c0_8 = arith.constant 0 : index
    %17 = vector.load %arg6[%c0_7, %c0_8] : memref<2x2048xf32, #tpu.memory_space<vmem>>, vector<2x2048xf32>
    %c0_9 = arith.constant 0 : index
    %c0_10 = arith.constant 0 : index
    %18 = vector.load %arg4[%c0_9, %c0_10] : memref<1x2048xf32, #tpu.memory_space<vmem>>, vector<1x2048xf32>
    %19 = vector.broadcast %18 : vector<1x2048xf32> to vector<2x2048xf32>
    %20 = math.powf %17, %19 : vector<2x2048xf32>
    %c0_11 = arith.constant 0 : index
    %c0_12 = arith.constant 0 : index
    %21 = vector.load %arg5[%c0_11, %c0_12] : memref<2x2048xf32, #tpu.memory_space<vmem>>, vector<2x2048xf32>
    tpu.vector_store %arg5[%c0_11, %c0_12], %20 {strides = array<i32>} : memref<2x2048xf32, #tpu.memory_space<vmem>>, vector<2x2048xf32>,
    return
  }
  func.func @transform_0(%arg0: i32, %arg1: i32) -> (i32, i32, i32) {
    %c0_i32 = arith.constant 0 : i32
    %c0_i32_0 = arith.constant 0 : i32
    return %arg0, %c0_i32, %arg1 : i32, i32, i32
  }
  func.func @transform_1(%arg0: i32, %arg1: i32) -> (i32, i32) {
    %c0_i32 = arith.constant 0 : i32
    %c0_i32_0 = arith.constant 0 : i32
    return %c0_i32, %arg1 : i32, i32
  }
  func.func @transform_2(%arg0: i32, %arg1: i32) -> (i32, i32) {
    %c0_i32 = arith.constant 0 : i32
    %c0_i32_0 = arith.constant 0 : i32
    return %c0_i32, %arg1 : i32, i32
  }
  func.func @transform_3(%arg0: i32, %arg1: i32) -> (i32, i32) {
    %c0_i32 = arith.constant 0 : i32
    return %arg0, %arg1 : i32, i32
  }
}

</mosaic_0001>

<llo_original>
// kernel: tpu_custom_call.1
$region0: #{tpu_custom_call.1}
  #allocation0 [shape = 'u32[]', space=smem, size = 0x4, offset = 0x4, fixed_abs, tag = 'smem constant byte address 0x4 - core index']
  #allocation1 [shape = 'u32[72,128]{1,0:T(1,128)}', space=vmem, size = 0x9000, scoped, tag = 'internal scratch']
  #allocation2 [shape = 'f32[2,2048]{1,0:T(2,128)}', space=vmem, size = 0x4000, scoped, tag = 'scratch operand']
  %s0 = inlined_call_operand.vmem [shape: f32[2,49,2048], index: 0, kind: input, shape index: {}]
  %s1 = inlined_call_operand.vmem [shape: f32[1,2048], index: 1, kind: input, shape index: {}]
  %s2 = inlined_call_operand.vmem [shape: f32[1,2048], index: 2, kind: input, shape index: {}]
  %s3 = inlined_call_operand.hbm [shape: f32[2,2048], index: 3, kind: output, shape index: {}]
  %s4 = sld [smem:[#allocation0]]
  $region22: #{tpu_custom_call.1} parent=0
    _
  %s6 = ssub.s32 1, %s4
  %s7 = scalar_select 0, %s6, %s4
  $region1: #{tpu_custom_call.1} parent=0
    #allocation3 [shape = 'u8[16384]{0}', space=vmem, size = 0x4000, scoped, tag = 'output window, operand 0, single buffered']
    #allocation4 [shape = 's32[1]{0}', space=sflag, size = 0x4, scoped, tag = 'scoped memory for tpu_custom_call.1']
    %8 = vsyncpa [#allocation4], 0
    // Predicated region
    $region2: #{tpu_custom_call.1} parent=1 // pred_check
      _
    $region3: #{tpu_custom_call.1} parent=1 // pred_check_branch
      %10 = sbr.rel (0) target = $region5
    $region4: #{tpu_custom_call.1} parent=1 // pred_region
      _
    $region5: #{tpu_custom_call.1} parent=1 // pred_fallthru
      _
    // Predicated region
    $region6: #{tpu_custom_call.1} parent=1 // pred_check
      _
    $region7: #{tpu_custom_call.1} parent=1 // pred_check_branch
      %12 = sbr.rel (0) target = $region9
    $region8: #{tpu_custom_call.1} parent=1 // pred_region
      _
    $region9: #{tpu_custom_call.1} parent=1 // pred_fallthru
      _
    // Predicated region
    $region10: #{tpu_custom_call.1} parent=1 // pred_check
      _
    $region11: #{tpu_custom_call.1} parent=1 // pred_check_branch
      %14 = sbr.rel (0) target = $region13
    $region12: #{tpu_custom_call.1} parent=1 // pred_region
      _
    $region13: #{tpu_custom_call.1} parent=1 // pred_fallthru
      _
    %v15 = vld [vmem:[%s0] sm:$0xff]
    %v16 = vld [vmem:[%s0 + $0x8] sm:$0xff]
    %v17 = vld [vmem:[%s0 + $0x10] sm:$0xff]
    %v18 = vld [vmem:[%s0 + $0x18] sm:$0xff]
    %v19 = vld [vmem:[%s0 + $0x20] sm:$0xff]
    %v20 = vld [vmem:[%s0 + $0x28] sm:$0xff]
    %v21 = vld [vmem:[%s0 + $0x30] sm:$0xff]
    %v22 = vld [vmem:[%s0 + $0x38] sm:$0xff]
    %v23 = vld [vmem:[%s0 + $0x40] sm:$0xff]
    %v24 = vld [vmem:[%s0 + $0x48] sm:$0xff]
    %v25 = vld [vmem:[%s0 + $0x50] sm:$0xff]
    %v26 = vld [vmem:[%s0 + $0x58] sm:$0xff]
    %v27 = vld [vmem:[%s0 + $0x60] sm:$0xff]
    %v28 = vld [vmem:[%s0 + $0x68] sm:$0xff]
    %v29 = vld [vmem:[%s0 + $0x70] sm:$0xff]
    %v30 = vld [vmem:[%s0 + $0x78] sm:$0xff]
    %v31 = vld [vmem:[%s0 + $0x80] sm:$0xff]
    %v32 = vld [vmem:[%s0 + $0x88] sm:$0xff]
    %v33 = vld [vmem:[%s0 + $0x90] sm:$0xff]
    %v34 = vld [vmem:[%s0 + $0x98] sm:$0xff]
    %v35 = vld [vmem:[%s0 + $0xa0] sm:$0xff]
    %v36 = vld [vmem:[%s0 + $0xa8] sm:$0xff]
    %v37 = vld [vmem:[%s0 + $0xb0] sm:$0xff]
    %v38 = vld [vmem:[%s0 + $0xb8] sm:$0xff]
    %v39 = vld [vmem:[%s0 + $0xc0] sm:$0xff]
    %v40 = vld [vmem:[%s0 + $0xc8] sm:$0xff]
    %v41 = vld [vmem:[%s0 + $0xd0] sm:$0xff]
    %v42 = vld [vmem:[%s0 + $0xd8] sm:$0xff]
    %v43 = vld [vmem:[%s0 + $0xe0] sm:$0xff]
    %v44 = vld [vmem:[%s0 + $0xe8] sm:$0xff]
    %v45 = vld [vmem:[%s0 + $0xf0] sm:$0xff]
    %v46 = vld [vmem:[%s0 + $0xf8] sm:$0xff]
    %v47 = vld [vmem:[%s0 + $0x100] sm:$0xff]
    %v48 = vld [vmem:[%s0 + $0x108] sm:$0xff]
    %v49 = vld [vmem:[%s0 + $0x110] sm:$0xff]
    %v50 = vld [vmem:[%s0 + $0x118] sm:$0xff]
    %v51 = vld [vmem:[%s0 + $0x120] sm:$0xff]
    %v52 = vld [vmem:[%s0 + $0x128] sm:$0xff]
    %v53 = vld [vmem:[%s0 + $0x130] sm:$0xff]
    %v54 = vld [vmem:[%s0 + $0x138] sm:$0xff]
    %v55 = vld [vmem:[%s0 + $0x140] sm:$0xff]
    %v56 = vld [vmem:[%s0 + $0x148] sm:$0xff]
    %v57 = vld [vmem:[%s0 + $0x150] sm:$0xff]
    %v58 = vld [vmem:[%s0 + $0x158] sm:$0xff]
    %v59 = vld [vmem:[%s0 + $0x160] sm:$0xff]
    %v60 = vld [vmem:[%s0 + $0x168] sm:$0xff]
    %v61 = vld [vmem:[%s0 + $0x170] sm:$0xff]
    %v62 = vld [vmem:[%s0 + $0x178] sm:$0xff]
    %v63 = vld [vmem:[%s0 + $0x180] sm:$0xff]
    %v64 = vld [vmem:[%s0 + $0x188] sm:$0xff]
    %v65 = vld [vmem:[%s0 + $0x190] sm:$0xff]
    %v66 = vld [vmem:[%s0 + $0x198] sm:$0xff]
    %v67 = vld [vmem:[%s0 + $0x1a0] sm:$0xff]
    %v68 = vld [vmem:[%s0 + $0x1a8] sm:$0xff]
    %v69 = vld [vmem:[%s0 + $0x1b0] sm:$0xff]
    %v70 = vld [vmem:[%s0 + $0x1b8] sm:$0xff]
    %v71 = vld [vmem:[%s0 + $0x1c0] sm:$0xff]
    %v72 = vld [vmem:[%s0 + $0x1c8] sm:$0xff]
    %v73 = vld [vmem:[%s0 + $0x1d0] sm:$0xff]
    %v74 = vld [vmem:[%s0 + $0x1d8] sm:$0xff]
    %v75 = vld [vmem:[%s0 + $0x1e0] sm:$0xff]
    %v76 = vld [vmem:[%s0 + $0x1e8] sm:$0xff]
    %v77 = vld [vmem:[%s0 + $0x1f0] sm:$0xff]
    %v78 = vld [vmem:[%s0 + $0x1f8] sm:$0xff]
    %v79 = vld [vmem:[%s0 + $0x200] sm:$0xff]
    %v80 = vld [vmem:[%s0 + $0x208] sm:$0xff]
    %v81 = vld [vmem:[%s0 + $0x210] sm:$0xff]
    %v82 = vld [vmem:[%s0 + $0x218] sm:$0xff]
    %v83 = vld [vmem:[%s0 + $0x220] sm:$0xff]
    %v84 = vld [vmem:[%s0 + $0x228] sm:$0xff]
    %v85 = vld [vmem:[%s0 + $0x230] sm:$0xff]
    %v86 = vld [vmem:[%s0 + $0x238] sm:$0xff]
    %v87 = vld [vmem:[%s0 + $0x240] sm:$0xff]
    %v88 = vld [vmem:[%s0 + $0x248] sm:$0xff]
    %v89 = vld [vmem:[%s0 + $0x250] sm:$0xff]
    %v90 = vld [vmem:[%s0 + $0x258] sm:$0xff]
    %v91 = vld [vmem:[%s0 + $0x260] sm:$0xff]
    %v92 = vld [vmem:[%s0 + $0x268] sm:$0xff]
    %v93 = vld [vmem:[%s0 + $0x270] sm:$0xff]
    %v94 = vld [vmem:[%s0 + $0x278] sm:$0xff]
    %v95 = vld [vmem:[%s0 + $0x280] sm:$0xff]
    %v96 = vld [vmem:[%s0 + $0x288] sm:$0xff]
    %v97 = vld [vmem:[%s0 + $0x290] sm:$0xff]
    %v98 = vld [vmem:[%s0 + $0x298] sm:$0xff]
    %v99 = vld [vmem:[%s0 + $0x2a0] sm:$0xff]
    %v100 = vld [vmem:[%s0 + $0x2a8] sm:$0xff]
    %v101 = vld [vmem:[%s0 + $0x2b0] sm:$0xff]
    %v102 = vld [vmem:[%s0 + $0x2b8] sm:$0xff]
    %v103 = vld [vmem:[%s0 + $0x2c0] sm:$0xff]
    %v104 = vld [vmem:[%s0 + $0x2c8] sm:$0xff]
    %v105 = vld [vmem:[%s0 + $0x2d0] sm:$0xff]
    %v106 = vld [vmem:[%s0 + $0x2d8] sm:$0xff]
    %v107 = vld [vmem:[%s0 + $0x2e0] sm:$0xff]
    %v108 = vld [vmem:[%s0 + $0x2e8] sm:$0xff]
    %v109 = vld [vmem:[%s0 + $0x2f0] sm:$0xff]
    %v110 = vld [vmem:[%s0 + $0x2f8] sm:$0xff]
    %v111 = vld [vmem:[%s0 + $0x300] sm:$0x1]
    %v112 = vld [vmem:[%s0 + $0x308] sm:$0x1]
    %v113 = vld [vmem:[%s0 + $0x310] sm:$0x1]
    %v114 = vld [vmem:[%s0 + $0x318] sm:$0x1]
    %v115 = vld [vmem:[%s0 + $0x320] sm:$0x1]
    %v116 = vld [vmem:[%s0 + $0x328] sm:$0x1]
    %v117 = vld [vmem:[%s0 + $0x330] sm:$0x1]
    %v118 = vld [vmem:[%s0 + $0x338] sm:$0x1]
    %v119 = vld [vmem:[%s0 + $0x340] sm:$0x1]
    %v120 = vld [vmem:[%s0 + $0x348] sm:$0x1]
    %v121 = vld [vmem:[%s0 + $0x350] sm:$0x1]
    %v122 = vld [vmem:[%s0 + $0x358] sm:$0x1]
    %v123 = vld [vmem:[%s0 + $0x360] sm:$0x1]
    %v124 = vld [vmem:[%s0 + $0x368] sm:$0x1]
    %v125 = vld [vmem:[%s0 + $0x370] sm:$0x1]
    %v126 = vld [vmem:[%s0 + $0x378] sm:$0x1]
    %v127 = vmul.f32 %v15, %v15
    %v128 = vmul.f32 %v16, %v16
    %v129 = vmul.f32 %v17, %v17
    %v130 = vmul.f32 %v18, %v18
    %v131 = vmul.f32 %v19, %v19
    %v132 = vmul.f32 %v20, %v20
    %v133 = vmul.f32 %v21, %v21
    %v134 = vmul.f32 %v22, %v22
    %v135 = vmul.f32 %v23, %v23
    %v136 = vmul.f32 %v24, %v24
    %v137 = vmul.f32 %v25, %v25
    %v138 = vmul.f32 %v26, %v26
    %v139 = vmul.f32 %v27, %v27
    %v140 = vmul.f32 %v28, %v28
    %v141 = vmul.f32 %v29, %v29
    %v142 = vmul.f32 %v30, %v30
    %v143 = vmul.f32 %v31, %v31
    %v144 = vmul.f32 %v32, %v32
    %v145 = vmul.f32 %v33, %v33
    %v146 = vmul.f32 %v34, %v34
    %v147 = vmul.f32 %v35, %v35
    %v148 = vmul.f32 %v36, %v36
    %v149 = vmul.f32 %v37, %v37
    %v150 = vmul.f32 %v38, %v38
    %v151 = vmul.f32 %v39, %v39
    %v152 = vmul.f32 %v40, %v40
    %v153 = vmul.f32 %v41, %v41
    %v154 = vmul.f32 %v42, %v42
    %v155 = vmul.f32 %v43, %v43
    %v156 = vmul.f32 %v44, %v44
    %v157 = vmul.f32 %v45, %v45
    %v158 = vmul.f32 %v46, %v46
    %v159 = vmul.f32 %v47, %v47
    %v160 = vmul.f32 %v48, %v48
    %v161 = vmul.f32 %v49, %v49
    %v162 = vmul.f32 %v50, %v50
    %v163 = vmul.f32 %v51, %v51
    %v164 = vmul.f32 %v52, %v52
    %v165 = vmul.f32 %v53, %v53
    %v166 = vmul.f32 %v54, %v54
    %v167 = vmul.f32 %v55, %v55
    %v168 = vmul.f32 %v56, %v56
    %v169 = vmul.f32 %v57, %v57
    %v170 = vmul.f32 %v58, %v58
    %v171 = vmul.f32 %v59, %v59
    %v172 = vmul.f32 %v60, %v60
    %v173 = vmul.f32 %v61, %v61
    %v174 = vmul.f32 %v62, %v62
    %v175 = vmul.f32 %v63, %v63
    %v176 = vmul.f32 %v64, %v64
    %v177 = vmul.f32 %v65, %v65
    %v178 = vmul.f32 %v66, %v66
    %v179 = vmul.f32 %v67, %v67
    %v180 = vmul.f32 %v68, %v68
    %v181 = vmul.f32 %v69, %v69
    %v182 = vmul.f32 %v70, %v70
    %v183 = vmul.f32 %v71, %v71
    %v184 = vmul.f32 %v72, %v72
    %v185 = vmul.f32 %v73, %v73
    %v186 = vmul.f32 %v74, %v74
    %v187 = vmul.f32 %v75, %v75
    %v188 = vmul.f32 %v76, %v76
    %v189 = vmul.f32 %v77, %v77
    %v190 = vmul.f32 %v78, %v78
    %v191 = vmul.f32 %v79, %v79
    %v192 = vmul.f32 %v80, %v80
    %v193 = vmul.f32 %v81, %v81
    %v194 = vmul.f32 %v82, %v82
    %v195 = vmul.f32 %v83, %v83
    %v196 = vmul.f32 %v84, %v84
    %v197 = vmul.f32 %v85, %v85
    %v198 = vmul.f32 %v86, %v86
    %v199 = vmul.f32 %v87, %v87
    %v200 = vmul.f32 %v88, %v88
    %v201 = vmul.f32 %v89, %v89
    %v202 = vmul.f32 %v90, %v90
    %v203 = vmul.f32 %v91, %v91
    %v204 = vmul.f32 %v92, %v92
    %v205 = vmul.f32 %v93, %v93
    %v206 = vmul.f32 %v94, %v94
    %v207 = vmul.f32 %v95, %v95
    %v208 = vmul.f32 %v96, %v96
    %v209 = vmul.f32 %v97, %v97
    %v210 = vmul.f32 %v98, %v98
    %v211 = vmul.f32 %v99, %v99
    %v212 = vmul.f32 %v100, %v100
    %v213 = vmul.f32 %v101, %v101
    %v214 = vmul.f32 %v102, %v102
    %v215 = vmul.f32 %v103, %v103
    %v216 = vmul.f32 %v104, %v104
    %v217 = vmul.f32 %v105, %v105
    %v218 = vmul.f32 %v106, %v106
    %v219 = vmul.f32 %v107, %v107
    %v220 = vmul.f32 %v108, %v108
    %v221 = vmul.f32 %v109, %v109
    %v222 = vmul.f32 %v110, %v110
    %v223 = vmul.f32 %v111, %v111
    %v224 = vmul.f32 %v112, %v112
    %v225 = vmul.f32 %v113, %v113
    %v226 = vmul.f32 %v114, %v114
    %v227 = vmul.f32 %v115, %v115
    %v228 = vmul.f32 %v116, %v116
    %v229 = vmul.f32 %v117, %v117
    %v230 = vmul.f32 %v118, %v118
    %v231 = vmul.f32 %v119, %v119
    %v232 = vmul.f32 %v120, %v120
    %v233 = vmul.f32 %v121, %v121
    %v234 = vmul.f32 %v122, %v122
    %v235 = vmul.f32 %v123, %v123
    %v236 = vmul.f32 %v124, %v124
    %v237 = vmul.f32 %v125, %v125
    %v238 = vmul.f32 %v126, %v126
    %v239 = vmul.f32 %v15, %v127
    %v240 = vmul.f32 %v16, %v128
    %v241 = vmul.f32 %v17, %v129
    %v242 = vmul.f32 %v18, %v130
    %v243 = vmul.f32 %v19, %v131
    %v244 = vmul.f32 %v20, %v132
    %v245 = vmul.f32 %v21, %v133
    %v246 = vmul.f32 %v22, %v134
    %v247 = vmul.f32 %v23, %v135
    %v248 = vmul.f32 %v24, %v136
    %v249 = vmul.f32 %v25, %v137
    %v250 = vmul.f32 %v26, %v138
    %v251 = vmul.f32 %v27, %v139
    %v252 = vmul.f32 %v28, %v140
    %v253 = vmul.f32 %v29, %v141
    %v254 = vmul.f32 %v30, %v142
    %v255 = vmul.f32 %v31, %v143
    %v256 = vmul.f32 %v32, %v144
    %v257 = vmul.f32 %v33, %v145
    %v258 = vmul.f32 %v34, %v146
    %v259 = vmul.f32 %v35, %v147
    %v260 = vmul.f32 %v36, %v148
    %v261 = vmul.f32 %v37, %v149
    %v262 = vmul.f32 %v38, %v150
    %v263 = vmul.f32 %v39, %v151
    %v264 = vmul.f32 %v40, %v152
    %v265 = vmul.f32 %v41, %v153
    %v266 = vmul.f32 %v42, %v154
    %v267 = vmul.f32 %v43, %v155
    %v268 = vmul.f32 %v44, %v156
    %v269 = vmul.f32 %v45, %v157
    %v270 = vmul.f32 %v46, %v158
    %v271 = vmul.f32 %v47, %v159
    %v272 = vmul.f32 %v48, %v160
    %v273 = vmul.f32 %v49, %v161
    %v274 = vmul.f32 %v50, %v162
    %v275 = vmul.f32 %v51, %v163
    %v276 = vmul.f32 %v52, %v164
    %v277 = vmul.f32 %v53, %v165
    %v278 = vmul.f32 %v54, %v166
    %v279 = vmul.f32 %v55, %v167
    %v280 = vmul.f32 %v56, %v168
    %v281 = vmul.f32 %v57, %v169
    %v282 = vmul.f32 %v58, %v170
    %v283 = vmul.f32 %v59, %v171
    %v284 = vmul.f32 %v60, %v172
    %v285 = vmul.f32 %v61, %v173
    %v286 = vmul.f32 %v62, %v174
    %v287 = vmul.f32 %v63, %v175
    %v288 = vmul.f32 %v64, %v176
    %v289 = vmul.f32 %v65, %v177
    %v290 = vmul.f32 %v66, %v178
    %v291 = vmul.f32 %v67, %v179
    %v292 = vmul.f32 %v68, %v180
    %v293 = vmul.f32 %v69, %v181
    %v294 = vmul.f32 %v70, %v182
    %v295 = vmul.f32 %v71, %v183
    %v296 = vmul.f32 %v72, %v184
    %v297 = vmul.f32 %v73, %v185
    %v298 = vmul.f32 %v74, %v186
    %v299 = vmul.f32 %v75, %v187
    %v300 = vmul.f32 %v76, %v188
    %v301 = vmul.f32 %v77, %v189
    %v302 = vmul.f32 %v78, %v190
    %v303 = vmul.f32 %v79, %v191
    %v304 = vmul.f32 %v80, %v192
    %v305 = vmul.f32 %v81, %v193
    %v306 = vmul.f32 %v82, %v194
    %v307 = vmul.f32 %v83, %v195
    %v308 = vmul.f32 %v84, %v196
    %v309 = vmul.f32 %v85, %v197
    %v310 = vmul.f32 %v86, %v198
    %v311 = vmul.f32 %v87, %v199
    %v312 = vmul.f32 %v88, %v200
    %v313 = vmul.f32 %v89, %v201
    %v314 = vmul.f32 %v90, %v202
    %v315 = vmul.f32 %v91, %v203
    %v316 = vmul.f32 %v92, %v204
    %v317 = vmul.f32 %v93, %v205
    %v318 = vmul.f32 %v94, %v206
    %v319 = vmul.f32 %v95, %v207
    %v320 = vmul.f32 %v96, %v208
    %v321 = vmul.f32 %v97, %v209
    %v322 = vmul.f32 %v98, %v210
    %v323 = vmul.f32 %v99, %v211
    %v324 = vmul.f32 %v100, %v212
    %v325 = vmul.f32 %v101, %v213
    %v326 = vmul.f32 %v102, %v214
    %v327 = vmul.f32 %v103, %v215
    %v328 = vmul.f32 %v104, %v216
    %v329 = vmul.f32 %v105, %v217
    %v330 = vmul.f32 %v106, %v218
    %v331 = vmul.f32 %v107, %v219
    %v332 = vmul.f32 %v108, %v220
    %v333 = vmul.f32 %v109, %v221
    %v334 = vmul.f32 %v110, %v222
    %v335 = vmul.f32 %v111, %v223
    %v336 = vmul.f32 %v112, %v224
    %v337 = vmul.f32 %v113, %v225
    %v338 = vmul.f32 %v114, %v226
    %v339 = vmul.f32 %v115, %v227
    %v340 = vmul.f32 %v116, %v228
    %v341 = vmul.f32 %v117, %v229
    %v342 = vmul.f32 %v118, %v230
    %v343 = vmul.f32 %v119, %v231
    %v344 = vmul.f32 %v120, %v232
    %v345 = vmul.f32 %v121, %v233
    %v346 = vmul.f32 %v122, %v234
    %v347 = vmul.f32 %v123, %v235
    %v348 = vmul.f32 %v124, %v236
    %v349 = vmul.f32 %v125, %v237
    %v350 = vmul.f32 %v126, %v238
    %vm351 = vcmask 400384
    %v353 = vsel %vm351, 0.020408163, 0
    %vm355 = vcmask 1040384
    %v357 = vsel %vm355, %v335, 0
    %v360 = vsel %vm355, %v336, 0
    %v363 = vsel %vm355, %v337, 0
    %v366 = vsel %vm355, %v338, 0
    %v369 = vsel %vm355, %v339, 0
    %v372 = vsel %vm355, %v340, 0
    %v375 = vsel %vm355, %v341, 0
    %v378 = vsel %vm355, %v342, 0
    %v381 = vsel %vm355, %v343, 0
    %v384 = vsel %vm355, %v344, 0
    %v387 = vsel %vm355, %v345, 0
    %v390 = vsel %vm355, %v346, 0
    %v393 = vsel %vm355, %v347, 0
    %v396 = vsel %vm355, %v348, 0
    %v399 = vsel %vm355, %v349, 0
    %v402 = vsel %vm355, %v350, 0
    %404 = vmatpush.msra.mxu0 0.0
    %405 = vmatpush.msra.mxu0 0.0
    %406 = vmatpush.msra.mxu0 0.0
    %407 = vmatpush.msra.mxu0 0.0
    %408 = vmatpush.msra.mxu0 0.0
    %409 = vmatpush.msra.mxu0 0.0
    %410 = vmatpush.msra.mxu0 0.0
    %411 = vmatpush.msra.mxu0 0.0
    %412 = vmatpush.msra.mxu0 0.0
    %413 = vmatpush.msra.mxu0 %v357
    %414 = vmatpush.msra.mxu0 %v319
    %415 = vmatpush.msra.mxu0 %v303
    %416 = vmatpush.msra.mxu0 %v287
    %417 = vmatpush.msra.mxu0 %v271
    %418 = vmatpush.msra.mxu0 %v255
    %419 = vmatpush.msra.mxu0 %v239
    %420 = vmatmul.f32.gmra.mxu0 %v353
    %v421 = vpop.f32.mrf.mxu0
    %v422 = vadd.f32 0.0, %v421
    %423 = vdwg.mxu0
    %424 = vmatpush.msra.mxu0 0.0
    %425 = vmatpush.msra.mxu0 0.0
    %426 = vmatpush.msra.mxu0 0.0
    %427 = vmatpush.msra.mxu0 0.0
    %428 = vmatpush.msra.mxu0 0.0
    %429 = vmatpush.msra.mxu0 0.0
    %430 = vmatpush.msra.mxu0 0.0
    %431 = vmatpush.msra.mxu0 0.0
    %432 = vmatpush.msra.mxu0 0.0
    %433 = vmatpush.msra.mxu0 %v360
    %434 = vmatpush.msra.mxu0 %v320
    %435 = vmatpush.msra.mxu0 %v304
    %436 = vmatpush.msra.mxu0 %v288
    %437 = vmatpush.msra.mxu0 %v272
    %438 = vmatpush.msra.mxu0 %v256
    %439 = vmatpush.msra.mxu0 %v240
    %440 = vmatmul.f32.gmra.mxu0 %v353
    %v441 = vpop.f32.mrf.mxu0
    %v442 = vadd.f32 0.0, %v441
    %443 = vdwg.mxu0
    %444 = vmatpush.msra.mxu0 0.0
    %445 = vmatpush.msra.mxu0 0.0
    %446 = vmatpush.msra.mxu0 0.0
    %447 = vmatpush.msra.mxu0 0.0
    %448 = vmatpush.msra.mxu0 0.0
    %449 = vmatpush.msra.mxu0 0.0
    %450 = vmatpush.msra.mxu0 0.0
    %451 = vmatpush.msra.mxu0 0.0
    %452 = vmatpush.msra.mxu0 0.0
    %453 = vmatpush.msra.mxu0 %v363
    %454 = vmatpush.msra.mxu0 %v321
    %455 = vmatpush.msra.mxu0 %v305
    %456 = vmatpush.msra.mxu0 %v289
    %457 = vmatpush.msra.mxu0 %v273
    %458 = vmatpush.msra.mxu0 %v257
    %459 = vmatpush.msra.mxu0 %v241
    %460 = vmatmul.f32.gmra.mxu0 %v353
    %v461 = vpop.f32.mrf.mxu0
    %v462 = vadd.f32 0.0, %v461
    %463 = vdwg.mxu0
    %464 = vmatpush.msra.mxu0 0.0
    %465 = vmatpush.msra.mxu0 0.0
    %466 = vmatpush.msra.mxu0 0.0
    %467 = vmatpush.msra.mxu0 0.0
    %468 = vmatpush.msra.mxu0 0.0
    %469 = vmatpush.msra.mxu0 0.0
    %470 = vmatpush.msra.mxu0 0.0
    %471 = vmatpush.msra.mxu0 0.0
    %472 = vmatpush.msra.mxu0 0.0
    %473 = vmatpush.msra.mxu0 %v366
    %474 = vmatpush.msra.mxu0 %v322
    %475 = vmatpush.msra.mxu0 %v306
    %476 = vmatpush.msra.mxu0 %v290
    %477 = vmatpush.msra.mxu0 %v274
    %478 = vmatpush.msra.mxu0 %v258
    %479 = vmatpush.msra.mxu0 %v242
    %480 = vmatmul.f32.gmra.mxu0 %v353
    %v481 = vpop.f32.mrf.mxu0
    %v482 = vadd.f32 0.0, %v481
    %483 = vdwg.mxu0
    %484 = vmatpush.msra.mxu0 0.0
    %485 = vmatpush.msra.mxu0 0.0
    %486 = vmatpush.msra.mxu0 0.0
    %487 = vmatpush.msra.mxu0 0.0
    %488 = vmatpush.msra.mxu0 0.0
    %489 = vmatpush.msra.mxu0 0.0
    %490 = vmatpush.msra.mxu0 0.0
    %491 = vmatpush.msra.mxu0 0.0
    %492 = vmatpush.msra.mxu0 0.0
    %493 = vmatpush.msra.mxu0 %v369
    %494 = vmatpush.msra.mxu0 %v323
    %495 = vmatpush.msra.mxu0 %v307
    %496 = vmatpush.msra.mxu0 %v291
    %497 = vmatpush.msra.mxu0 %v275
    %498 = vmatpush.msra.mxu0 %v259
    %499 = vmatpush.msra.mxu0 %v243
    %500 = vmatmul.f32.gmra.mxu0 %v353
    %v501 = vpop.f32.mrf.mxu0
    %v502 = vadd.f32 0.0, %v501
    %503 = vdwg.mxu0
    %504 = vmatpush.msra.mxu0 0.0
    %505 = vmatpush.msra.mxu0 0.0
    %506 = vmatpush.msra.mxu0 0.0
    %507 = vmatpush.msra.mxu0 0.0
    %508 = vmatpush.msra.mxu0 0.0
    %509 = vmatpush.msra.mxu0 0.0
    %510 = vmatpush.msra.mxu0 0.0
    %511 = vmatpush.msra.mxu0 0.0
    %512 = vmatpush.msra.mxu0 0.0
    %513 = vmatpush.msra.mxu0 %v372
    %514 = vmatpush.msra.mxu0 %v324
    %515 = vmatpush.msra.mxu0 %v308
    %516 = vmatpush.msra.mxu0 %v292
    %517 = vmatpush.msra.mxu0 %v276
    %518 = vmatpush.msra.mxu0 %v260
    %519 = vmatpush.msra.mxu0 %v244
    %520 = vmatmul.f32.gmra.mxu0 %v353
    %v521 = vpop.f32.mrf.mxu0
    %v522 = vadd.f32 0.0, %v521
    %523 = vdwg.mxu0
    %524 = vmatpush.msra.mxu0 0.0
    %525 = vmatpush.msra.mxu0 0.0
    %526 = vmatpush.msra.mxu0 0.0
    %527 = vmatpush.msra.mxu0 0.0
    %528 = vmatpush.msra.mxu0 0.0
    %529 = vmatpush.msra.mxu0 0.0
    %530 = vmatpush.msra.mxu0 0.0
    %531 = vmatpush.msra.mxu0 0.0
    %532 = vmatpush.msra.mxu0 0.0
    %533 = vmatpush.msra.mxu0 %v375
    %534 = vmatpush.msra.mxu0 %v325
    %535 = vmatpush.msra.mxu0 %v309
    %536 = vmatpush.msra.mxu0 %v293
    %537 = vmatpush.msra.mxu0 %v277
    %538 = vmatpush.msra.mxu0 %v261
    %539 = vmatpush.msra.mxu0 %v245
    %540 = vmatmul.f32.gmra.mxu0 %v353
    %v541 = vpop.f32.mrf.mxu0
    %v542 = vadd.f32 0.0, %v541
    %543 = vdwg.mxu0
    %544 = vmatpush.msra.mxu0 0.0
    %545 = vmatpush.msra.mxu0 0.0
    %546 = vmatpush.msra.mxu0 0.0
    %547 = vmatpush.msra.mxu0 0.0
    %548 = vmatpush.msra.mxu0 0.0
    %549 = vmatpush.msra.mxu0 0.0
    %550 = vmatpush.msra.mxu0 0.0
    %551 = vmatpush.msra.mxu0 0.0
    %552 = vmatpush.msra.mxu0 0.0
    %553 = vmatpush.msra.mxu0 %v378
    %554 = vmatpush.msra.mxu0 %v326
    %555 = vmatpush.msra.mxu0 %v310
    %556 = vmatpush.msra.mxu0 %v294
    %557 = vmatpush.msra.mxu0 %v278
    %558 = vmatpush.msra.mxu0 %v262
    %559 = vmatpush.msra.mxu0 %v246
    %560 = vmatmul.f32.gmra.mxu0 %v353
    %v561 = vpop.f32.mrf.mxu0
    %v562 = vadd.f32 0.0, %v561
    %563 = vdwg.mxu0
    %564 = vmatpush.msra.mxu0 0.0
    %565 = vmatpush.msra.mxu0 0.0
    %566 = vmatpush.msra.mxu0 0.0
    %567 = vmatpush.msra.mxu0 0.0
    %568 = vmatpush.msra.mxu0 0.0
    %569 = vmatpush.msra.mxu0 0.0
    %570 = vmatpush.msra.mxu0 0.0
    %571 = vmatpush.msra.mxu0 0.0
    %572 = vmatpush.msra.mxu0 0.0
    %573 = vmatpush.msra.mxu0 %v381
    %574 = vmatpush.msra.mxu0 %v327
    %575 = vmatpush.msra.mxu0 %v311
    %576 = vmatpush.msra.mxu0 %v295
    %577 = vmatpush.msra.mxu0 %v279
    %578 = vmatpush.msra.mxu0 %v263
    %579 = vmatpush.msra.mxu0 %v247
    %580 = vmatmul.f32.gmra.mxu0 %v353
    %v581 = vpop.f32.mrf.mxu0
    %v582 = vadd.f32 0.0, %v581
    %583 = vdwg.mxu0
    %584 = vmatpush.msra.mxu0 0.0
    %585 = vmatpush.msra.mxu0 0.0
    %586 = vmatpush.msra.mxu0 0.0
    %587 = vmatpush.msra.mxu0 0.0
    %588 = vmatpush.msra.mxu0 0.0
    %589 = vmatpush.msra.mxu0 0.0
    %590 = vmatpush.msra.mxu0 0.0
    %591 = vmatpush.msra.mxu0 0.0
    %592 = vmatpush.msra.mxu0 0.0
    %593 = vmatpush.msra.mxu0 %v384
    %594 = vmatpush.msra.mxu0 %v328
    %595 = vmatpush.msra.mxu0 %v312
    %596 = vmatpush.msra.mxu0 %v296
    %597 = vmatpush.msra.mxu0 %v280
    %598 = vmatpush.msra.mxu0 %v264
    %599 = vmatpush.msra.mxu0 %v248
    %600 = vmatmul.f32.gmra.mxu0 %v353
    %v601 = vpop.f32.mrf.mxu0
    %v602 = vadd.f32 0.0, %v601
    %603 = vdwg.mxu0
    %604 = vmatpush.msra.mxu0 0.0
    %605 = vmatpush.msra.mxu0 0.0
    %606 = vmatpush.msra.mxu0 0.0
    %607 = vmatpush.msra.mxu0 0.0
    %608 = vmatpush.msra.mxu0 0.0
    %609 = vmatpush.msra.mxu0 0.0
    %610 = vmatpush.msra.mxu0 0.0
    %611 = vmatpush.msra.mxu0 0.0
    %612 = vmatpush.msra.mxu0 0.0
    %613 = vmatpush.msra.mxu0 %v387
    %614 = vmatpush.msra.mxu0 %v329
    %615 = vmatpush.msra.mxu0 %v313
    %616 = vmatpush.msra.mxu0 %v297
    %617 = vmatpush.msra.mxu0 %v281
    %618 = vmatpush.msra.mxu0 %v265
    %619 = vmatpush.msra.mxu0 %v249
    %620 = vmatmul.f32.gmra.mxu0 %v353
    %v621 = vpop.f32.mrf.mxu0
    %v622 = vadd.f32 0.0, %v621
    %623 = vdwg.mxu0
    %624 = vmatpush.msra.mxu0 0.0
    %625 = vmatpush.msra.mxu0 0.0
    %626 = vmatpush.msra.mxu0 0.0
    %627 = vmatpush.msra.mxu0 0.0
    %628 = vmatpush.msra.mxu0 0.0
    %629 = vmatpush.msra.mxu0 0.0
    %630 = vmatpush.msra.mxu0 0.0
    %631 = vmatpush.msra.mxu0 0.0
    %632 = vmatpush.msra.mxu0 0.0
    %633 = vmatpush.msra.mxu0 %v390
    %634 = vmatpush.msra.mxu0 %v330
    %635 = vmatpush.msra.mxu0 %v314
    %636 = vmatpush.msra.mxu0 %v298
    %637 = vmatpush.msra.mxu0 %v282
    %638 = vmatpush.msra.mxu0 %v266
    %639 = vmatpush.msra.mxu0 %v250
    %640 = vmatmul.f32.gmra.mxu0 %v353
    %v641 = vpop.f32.mrf.mxu0
    %v642 = vadd.f32 0.0, %v641
    %643 = vdwg.mxu0
    %644 = vmatpush.msra.mxu0 0.0
    %645 = vmatpush.msra.mxu0 0.0
    %646 = vmatpush.msra.mxu0 0.0
    %647 = vmatpush.msra.mxu0 0.0
    %648 = vmatpush.msra.mxu0 0.0
    %649 = vmatpush.msra.mxu0 0.0
    %650 = vmatpush.msra.mxu0 0.0
    %651 = vmatpush.msra.mxu0 0.0
    %652 = vmatpush.msra.mxu0 0.0
    %653 = vmatpush.msra.mxu0 %v393
    %654 = vmatpush.msra.mxu0 %v331
    %655 = vmatpush.msra.mxu0 %v315
    %656 = vmatpush.msra.mxu0 %v299
    %657 = vmatpush.msra.mxu0 %v283
    %658 = vmatpush.msra.mxu0 %v267
    %659 = vmatpush.msra.mxu0 %v251
    %660 = vmatmul.f32.gmra.mxu0 %v353
    %v661 = vpop.f32.mrf.mxu0
    %v662 = vadd.f32 0.0, %v661
    %663 = vdwg.mxu0
    %664 = vmatpush.msra.mxu0 0.0
    %665 = vmatpush.msra.mxu0 0.0
    %666 = vmatpush.msra.mxu0 0.0
    %667 = vmatpush.msra.mxu0 0.0
    %668 = vmatpush.msra.mxu0 0.0
    %669 = vmatpush.msra.mxu0 0.0
    %670 = vmatpush.msra.mxu0 0.0
    %671 = vmatpush.msra.mxu0 0.0
    %672 = vmatpush.msra.mxu0 0.0
    %673 = vmatpush.msra.mxu0 %v396
    %674 = vmatpush.msra.mxu0 %v332
    %675 = vmatpush.msra.mxu0 %v316
    %676 = vmatpush.msra.mxu0 %v300
    %677 = vmatpush.msra.mxu0 %v284
    %678 = vmatpush.msra.mxu0 %v268
    %679 = vmatpush.msra.mxu0 %v252
    %680 = vmatmul.f32.gmra.mxu0 %v353
    %v681 = vpop.f32.mrf.mxu0
    %v682 = vadd.f32 0.0, %v681
    %683 = vdwg.mxu0
    %684 = vmatpush.msra.mxu0 0.0
    %685 = vmatpush.msra.mxu0 0.0
    %686 = vmatpush.msra.mxu0 0.0
    %687 = vmatpush.msra.mxu0 0.0
    %688 = vmatpush.msra.mxu0 0.0
    %689 = vmatpush.msra.mxu0 0.0
    %690 = vmatpush.msra.mxu0 0.0
    %691 = vmatpush.msra.mxu0 0.0
    %692 = vmatpush.msra.mxu0 0.0
    %693 = vmatpush.msra.mxu0 %v399
    %694 = vmatpush.msra.mxu0 %v333
    %695 = vmatpush.msra.mxu0 %v317
    %696 = vmatpush.msra.mxu0 %v301
    %697 = vmatpush.msra.mxu0 %v285
    %698 = vmatpush.msra.mxu0 %v269
    %699 = vmatpush.msra.mxu0 %v253
    %700 = vmatmul.f32.gmra.mxu0 %v353
    %v701 = vpop.f32.mrf.mxu0
    %v702 = vadd.f32 0.0, %v701
    %703 = vdwg.mxu0
    %704 = vmatpush.msra.mxu0 0.0
    %705 = vmatpush.msra.mxu0 0.0
    %706 = vmatpush.msra.mxu0 0.0
    %707 = vmatpush.msra.mxu0 0.0
    %708 = vmatpush.msra.mxu0 0.0
    %709 = vmatpush.msra.mxu0 0.0
    %710 = vmatpush.msra.mxu0 0.0
    %711 = vmatpush.msra.mxu0 0.0
    %712 = vmatpush.msra.mxu0 0.0
    %713 = vmatpush.msra.mxu0 %v402
    %714 = vmatpush.msra.mxu0 %v334
    %715 = vmatpush.msra.mxu0 %v318
    %716 = vmatpush.msra.mxu0 %v302
    %717 = vmatpush.msra.mxu0 %v286
    %718 = vmatpush.msra.mxu0 %v270
    %719 = vmatpush.msra.mxu0 %v254
    %720 = vmatmul.f32.gmra.mxu0 %v353
    %v721 = vpop.f32.mrf.mxu0
    %v722 = vadd.f32 0.0, %v721
    %723 = vdwg.mxu0
    %v740 = vrot.slane %v442, 7
    %v741 = vrot.slane %v462, 6
    %v742 = vrot.slane %v482, 5
    %v743 = vrot.slane %v502, 4
    %v744 = vrot.slane %v522, 3
    %v745 = vrot.slane %v542, 2
    %v746 = vrot.slane %v562, 1
    %v747 = vrot.slane %v602, 7
    %v748 = vrot.slane %v622, 6
    %v749 = vrot.slane %v642, 5
    %v750 = vrot.slane %v662, 4
    %v751 = vrot.slane %v682, 3
    %v752 = vrot.slane %v702, 2
    %v753 = vrot.slane %v722, 1
    %v754 = vsel %vm355, %v422, %v740
    %vm755 = vcmask 1042434
    %v756 = vsel %vm755, %v741, %v742
    %vm757 = vcmask 1041408
    %v758 = vsel %vm757, %v754, %v756
    %vm759 = vcmask 1044484
    %v760 = vsel %vm759, %v743, %v744
    %vm761 = vcmask 1046534
    %v762 = vsel %vm761, %v745, %v746
    %vm763 = vcmask 1045508
    %v764 = vsel %vm763, %v760, %v762
    %vm765 = vcmask 1043456
    %v766 = vsel %vm765, %v758, %v764
    %v767 = vsel %vm355, %v582, %v747
    %v768 = vsel %vm755, %v748, %v749
    %v769 = vsel %vm757, %v767, %v768
    %v770 = vsel %vm759, %v750, %v751
    %v771 = vsel %vm761, %v752, %v753
    %v772 = vsel %vm763, %v770, %v771
    %v773 = vsel %vm765, %v769, %v772
    %776 = vst [vmem:[#allocation2] ss:$2 sm:$0xff] %v766
    %s777 = scalar_lea.vmem [#allocation2], 16
    %778 = vst [vmem:[%s777] ss:$2 sm:$0xff] %v773
    %s779 = scalar_lea.vmem %s0, 896
    %v780 = vld [vmem:[%s779] sm:$0xff]
    %v781 = vld [vmem:[%s779 + $0x8] sm:$0xff]
    %v782 = vld [vmem:[%s779 + $0x10] sm:$0xff]
    %v783 = vld [vmem:[%s779 + $0x18] sm:$0xff]
    %v784 = vld [vmem:[%s779 + $0x20] sm:$0xff]
    %v785 = vld [vmem:[%s779 + $0x28] sm:$0xff]
    %v786 = vld [vmem:[%s779 + $0x30] sm:$0xff]
    %v787 = vld [vmem:[%s779 + $0x38] sm:$0xff]
    %v788 = vld [vmem:[%s779 + $0x40] sm:$0xff]
    %v789 = vld [vmem:[%s779 + $0x48] sm:$0xff]
    %v790 = vld [vmem:[%s779 + $0x50] sm:$0xff]
    %v791 = vld [vmem:[%s779 + $0x58] sm:$0xff]
    %v792 = vld [vmem:[%s779 + $0x60] sm:$0xff]
    %v793 = vld [vmem:[%s779 + $0x68] sm:$0xff]
    %v794 = vld [vmem:[%s779 + $0x70] sm:$0xff]
    %v795 = vld [vmem:[%s779 + $0x78] sm:$0xff]
    %v796 = vld [vmem:[%s779 + $0x80] sm:$0xff]
    %v797 = vld [vmem:[%s779 + $0x88] sm:$0xff]
    %v798 = vld [vmem:[%s779 + $0x90] sm:$0xff]
    %v799 = vld [vmem:[%s779 + $0x98] sm:$0xff]
    %v800 = vld [vmem:[%s779 + $0xa0] sm:$0xff]
    %v801 = vld [vmem:[%s779 + $0xa8] sm:$0xff]
    %v802 = vld [vmem:[%s779 + $0xb0] sm:$0xff]
    %v803 = vld [vmem:[%s779 + $0xb8] sm:$0xff]
    %v804 = vld [vmem:[%s779 + $0xc0] sm:$0xff]
    %v805 = vld [vmem:[%s779 + $0xc8] sm:$0xff]
    %v806 = vld [vmem:[%s779 + $0xd0] sm:$0xff]
    %v807 = vld [vmem:[%s779 + $0xd8] sm:$0xff]
    %v808 = vld [vmem:[%s779 + $0xe0] sm:$0xff]
    %v809 = vld [vmem:[%s779 + $0xe8] sm:$0xff]
    %v810 = vld [vmem:[%s779 + $0xf0] sm:$0xff]
    %v811 = vld [vmem:[%s779 + $0xf8] sm:$0xff]
    %v812 = vld [vmem:[%s779 + $0x100] sm:$0xff]
    %v813 = vld [vmem:[%s779 + $0x108] sm:$0xff]
    %v814 = vld [vmem:[%s779 + $0x110] sm:$0xff]
    %v815 = vld [vmem:[%s779 + $0x118] sm:$0xff]
    %v816 = vld [vmem:[%s779 + $0x120] sm:$0xff]
    %v817 = vld [vmem:[%s779 + $0x128] sm:$0xff]
    %v818 = vld [vmem:[%s779 + $0x130] sm:$0xff]
    %v819 = vld [vmem:[%s779 + $0x138] sm:$0xff]
    %v820 = vld [vmem:[%s779 + $0x140] sm:$0xff]
    %v821 = vld [vmem:[%s779 + $0x148] sm:$0xff]
    %v822 = vld [vmem:[%s779 + $0x150] sm:$0xff]
    %v823 = vld [vmem:[%s779 + $0x158] sm:$0xff]
    %v824 = vld [vmem:[%s779 + $0x160] sm:$0xff]
    %v825 = vld [vmem:[%s779 + $0x168] sm:$0xff]
    %v826 = vld [vmem:[%s779 + $0x170] sm:$0xff]
    %v827 = vld [vmem:[%s779 + $0x178] sm:$0xff]
    %v828 = vld [vmem:[%s779 + $0x180] sm:$0xff]
    %v829 = vld [vmem:[%s779 + $0x188] sm:$0xff]
    %v830 = vld [vmem:[%s779 + $0x190] sm:$0xff]
    %v831 = vld [vmem:[%s779 + $0x198] sm:$0xff]
    %v832 = vld [vmem:[%s779 + $0x1a0] sm:$0xff]
    %v833 = vld [vmem:[%s779 + $0x1a8] sm:$0xff]
    %v834 = vld [vmem:[%s779 + $0x1b0] sm:$0xff]
    %v835 = vld [vmem:[%s779 + $0x1b8] sm:$0xff]
    %v836 = vld [vmem:[%s779 + $0x1c0] sm:$0xff]
    %v837 = vld [vmem:[%s779 + $0x1c8] sm:$0xff]
    %v838 = vld [vmem:[%s779 + $0x1d0] sm:$0xff]
    %v839 = vld [vmem:[%s779 + $0x1d8] sm:$0xff]
    %v840 = vld [vmem:[%s779 + $0x1e0] sm:$0xff]
    %v841 = vld [vmem:[%s779 + $0x1e8] sm:$0xff]
    %v842 = vld [vmem:[%s779 + $0x1f0] sm:$0xff]
    %v843 = vld [vmem:[%s779 + $0x1f8] sm:$0xff]
    %v844 = vld [vmem:[%s779 + $0x200] sm:$0xff]
    %v845 = vld [vmem:[%s779 + $0x208] sm:$0xff]
    %v846 = vld [vmem:[%s779 + $0x210] sm:$0xff]
    %v847 = vld [vmem:[%s779 + $0x218] sm:$0xff]
    %v848 = vld [vmem:[%s779 + $0x220] sm:$0xff]
    %v849 = vld [vmem:[%s779 + $0x228] sm:$0xff]
    %v850 = vld [vmem:[%s779 + $0x230] sm:$0xff]
    %v851 = vld [vmem:[%s779 + $0x238] sm:$0xff]
    %v852 = vld [vmem:[%s779 + $0x240] sm:$0xff]
    %v853 = vld [vmem:[%s779 + $0x248] sm:$0xff]
    %v854 = vld [vmem:[%s779 + $0x250] sm:$0xff]
    %v855 = vld [vmem:[%s779 + $0x258] sm:$0xff]
    %v856 = vld [vmem:[%s779 + $0x260] sm:$0xff]
    %v857 = vld [vmem:[%s779 + $0x268] sm:$0xff]
    %v858 = vld [vmem:[%s779 + $0x270] sm:$0xff]
    %v859 = vld [vmem:[%s779 + $0x278] sm:$0xff]
    %v860 = vld [vmem:[%s779 + $0x280] sm:$0xff]
    %v861 = vld [vmem:[%s779 + $0x288] sm:$0xff]
    %v862 = vld [vmem:[%s779 + $0x290] sm:$0xff]
    %v863 = vld [vmem:[%s779 + $0x298] sm:$0xff]
    %v864 = vld [vmem:[%s779 + $0x2a0] sm:$0xff]
    %v865 = vld [vmem:[%s779 + $0x2a8] sm:$0xff]
    %v866 = vld [vmem:[%s779 + $0x2b0] sm:$0xff]
    %v867 = vld [vmem:[%s779 + $0x2b8] sm:$0xff]
    %v868 = vld [vmem:[%s779 + $0x2c0] sm:$0xff]
    %v869 = vld [vmem:[%s779 + $0x2c8] sm:$0xff]
    %v870 = vld [vmem:[%s779 + $0x2d0] sm:$0xff]
    %v871 = vld [vmem:[%s779 + $0x2d8] sm:$0xff]
    %v872 = vld [vmem:[%s779 + $0x2e0] sm:$0xff]
    %v873 = vld [vmem:[%s779 + $0x2e8] sm:$0xff]
    %v874 = vld [vmem:[%s779 + $0x2f0] sm:$0xff]
    %v875 = vld [vmem:[%s779 + $0x2f8] sm:$0xff]
    %v876 = vld [vmem:[%s779 + $0x300] sm:$0x1]
    %v877 = vld [vmem:[%s779 + $0x308] sm:$0x1]
    %v878 = vld [vmem:[%s779 + $0x310] sm:$0x1]
    %v879 = vld [vmem:[%s779 + $0x318] sm:$0x1]
    %v880 = vld [vmem:[%s779 + $0x320] sm:$0x1]
    %v881 = vld [vmem:[%s779 + $0x328] sm:$0x1]
    %v882 = vld [vmem:[%s779 + $0x330] sm:$0x1]
    %v883 = vld [vmem:[%s779 + $0x338] sm:$0x1]
    %v884 = vld [vmem:[%s779 + $0x340] sm:$0x1]
    %v885 = vld [vmem:[%s779 + $0x348] sm:$0x1]
    %v886 = vld [vmem:[%s779 + $0x350] sm:$0x1]
    %v887 = vld [vmem:[%s779 + $0x358] sm:$0x1]
    %v888 = vld [vmem:[%s779 + $0x360] sm:$0x1]
    %v889 = vld [vmem:[%s779 + $0x368] sm:$0x1]
    %v890 = vld [vmem:[%s779 + $0x370] sm:$0x1]
    %v891 = vld [vmem:[%s779 + $0x378] sm:$0x1]
    %v892 = vmul.f32 %v780, %v780
    %v893 = vmul.f32 %v781, %v781
    %v894 = vmul.f32 %v782, %v782
    %v895 = vmul.f32 %v783, %v783
    %v896 = vmul.f32 %v784, %v784
    %v897 = vmul.f32 %v785, %v785
    %v898 = vmul.f32 %v786, %v786
    %v899 = vmul.f32 %v787, %v787
    %v900 = vmul.f32 %v788, %v788
    %v901 = vmul.f32 %v789, %v789
    %v902 = vmul.f32 %v790, %v790
    %v903 = vmul.f32 %v791, %v791
    %v904 = vmul.f32 %v792, %v792
    %v905 = vmul.f32 %v793, %v793
    %v906 = vmul.f32 %v794, %v794
    %v907 = vmul.f32 %v795, %v795
    %v908 = vmul.f32 %v796, %v796
    %v909 = vmul.f32 %v797, %v797
    %v910 = vmul.f32 %v798, %v798
    %v911 = vmul.f32 %v799, %v799
    %v912 = vmul.f32 %v800, %v800
    %v913 = vmul.f32 %v801, %v801
    %v914 = vmul.f32 %v802, %v802
    %v915 = vmul.f32 %v803, %v803
    %v916 = vmul.f32 %v804, %v804
    %v917 = vmul.f32 %v805, %v805
    %v918 = vmul.f32 %v806, %v806
    %v919 = vmul.f32 %v807, %v807
    %v920 = vmul.f32 %v808, %v808
    %v921 = vmul.f32 %v809, %v809
    %v922 = vmul.f32 %v810, %v810
    %v923 = vmul.f32 %v811, %v811
    %v924 = vmul.f32 %v812, %v812
    %v925 = vmul.f32 %v813, %v813
    %v926 = vmul.f32 %v814, %v814
    %v927 = vmul.f32 %v815, %v815
    %v928 = vmul.f32 %v816, %v816
    %v929 = vmul.f32 %v817, %v817
    %v930 = vmul.f32 %v818, %v818
    %v931 = vmul.f32 %v819, %v819
    %v932 = vmul.f32 %v820, %v820
    %v933 = vmul.f32 %v821, %v821
    %v934 = vmul.f32 %v822, %v822
    %v935 = vmul.f32 %v823, %v823
    %v936 = vmul.f32 %v824, %v824
    %v937 = vmul.f32 %v825, %v825
    %v938 = vmul.f32 %v826, %v826
    %v939 = vmul.f32 %v827, %v827
    %v940 = vmul.f32 %v828, %v828
    %v941 = vmul.f32 %v829, %v829
    %v942 = vmul.f32 %v830, %v830
    %v943 = vmul.f32 %v831, %v831
    %v944 = vmul.f32 %v832, %v832
    %v945 = vmul.f32 %v833, %v833
    %v946 = vmul.f32 %v834, %v834
    %v947 = vmul.f32 %v835, %v835
    %v948 = vmul.f32 %v836, %v836
    %v949 = vmul.f32 %v837, %v837
    %v950 = vmul.f32 %v838, %v838
    %v951 = vmul.f32 %v839, %v839
    %v952 = vmul.f32 %v840, %v840
    %v953 = vmul.f32 %v841, %v841
    %v954 = vmul.f32 %v842, %v842
    %v955 = vmul.f32 %v843, %v843
    %v956 = vmul.f32 %v844, %v844
    %v957 = vmul.f32 %v845, %v845
    %v958 = vmul.f32 %v846, %v846
    %v959 = vmul.f32 %v847, %v847
    %v960 = vmul.f32 %v848, %v848
    %v961 = vmul.f32 %v849, %v849
    %v962 = vmul.f32 %v850, %v850
    %v963 = vmul.f32 %v851, %v851
    %v964 = vmul.f32 %v852, %v852
    %v965 = vmul.f32 %v853, %v853
    %v966 = vmul.f32 %v854, %v854
    %v967 = vmul.f32 %v855, %v855
    %v968 = vmul.f32 %v856, %v856
    %v969 = vmul.f32 %v857, %v857
    %v970 = vmul.f32 %v858, %v858
    %v971 = vmul.f32 %v859, %v859
    %v972 = vmul.f32 %v860, %v860
    %v973 = vmul.f32 %v861, %v861
    %v974 = vmul.f32 %v862, %v862
    %v975 = vmul.f32 %v863, %v863
    %v976 = vmul.f32 %v864, %v864
    %v977 = vmul.f32 %v865, %v865
    %v978 = vmul.f32 %v866, %v866
    %v979 = vmul.f32 %v867, %v867
    %v980 = vmul.f32 %v868, %v868
    %v981 = vmul.f32 %v869, %v869
    %v982 = vmul.f32 %v870, %v870
    %v983 = vmul.f32 %v871, %v871
    %v984 = vmul.f32 %v872, %v872
    %v985 = vmul.f32 %v873, %v873
    %v986 = vmul.f32 %v874, %v874
    %v987 = vmul.f32 %v875, %v875
    %v988 = vmul.f32 %v876, %v876
    %v989 = vmul.f32 %v877, %v877
    %v990 = vmul.f32 %v878, %v878
    %v991 = vmul.f32 %v879, %v879
    %v992 = vmul.f32 %v880, %v880
    %v993 = vmul.f32 %v881, %v881
    %v994 = vmul.f32 %v882, %v882
    %v995 = vmul.f32 %v883, %v883
    %v996 = vmul.f32 %v884, %v884
    %v997 = vmul.f32 %v885, %v885
    %v998 = vmul.f32 %v886, %v886
    %v999 = vmul.f32 %v887, %v887
    %v1000 = vmul.f32 %v888, %v888
    %v1001 = vmul.f32 %v889, %v889
    %v1002 = vmul.f32 %v890, %v890
    %v1003 = vmul.f32 %v891, %v891
    %v1004 = vmul.f32 %v780, %v892
    %v1005 = vmul.f32 %v781, %v893
    %v1006 = vmul.f32 %v782, %v894
    %v1007 = vmul.f32 %v783, %v895
    %v1008 = vmul.f32 %v784, %v896
    %v1009 = vmul.f32 %v785, %v897
    %v1010 = vmul.f32 %v786, %v898
    %v1011 = vmul.f32 %v787, %v899
    %v1012 = vmul.f32 %v788, %v900
    %v1013 = vmul.f32 %v789, %v901
    %v1014 = vmul.f32 %v790, %v902
    %v1015 = vmul.f32 %v791, %v903
    %v1016 = vmul.f32 %v792, %v904
    %v1017 = vmul.f32 %v793, %v905
    %v1018 = vmul.f32 %v794, %v906
    %v1019 = vmul.f32 %v795, %v907
    %v1020 = vmul.f32 %v796, %v908
    %v1021 = vmul.f32 %v797, %v909
    %v1022 = vmul.f32 %v798, %v910
    %v1023 = vmul.f32 %v799, %v911
    %v1024 = vmul.f32 %v800, %v912
    %v1025 = vmul.f32 %v801, %v913
    %v1026 = vmul.f32 %v802, %v914
    %v1027 = vmul.f32 %v803, %v915
    %v1028 = vmul.f32 %v804, %v916
    %v1029 = vmul.f32 %v805, %v917
    %v1030 = vmul.f32 %v806, %v918
    %v1031 = vmul.f32 %v807, %v919
    %v1032 = vmul.f32 %v808, %v920
    %v1033 = vmul.f32 %v809, %v921
    %v1034 = vmul.f32 %v810, %v922
    %v1035 = vmul.f32 %v811, %v923
    %v1036 = vmul.f32 %v812, %v924
    %v1037 = vmul.f32 %v813, %v925
    %v1038 = vmul.f32 %v814, %v926
    %v1039 = vmul.f32 %v815, %v927
    %v1040 = vmul.f32 %v816, %v928
    %v1041 = vmul.f32 %v817, %v929
    %v1042 = vmul.f32 %v818, %v930
    %v1043 = vmul.f32 %v819, %v931
    %v1044 = vmul.f32 %v820, %v932
    %v1045 = vmul.f32 %v821, %v933
    %v1046 = vmul.f32 %v822, %v934
    %v1047 = vmul.f32 %v823, %v935
    %v1048 = vmul.f32 %v824, %v936
    %v1049 = vmul.f32 %v825, %v937
    %v1050 = vmul.f32 %v826, %v938
    %v1051 = vmul.f32 %v827, %v939
    %v1052 = vmul.f32 %v828, %v940
    %v1053 = vmul.f32 %v829, %v941
    %v1054 = vmul.f32 %v830, %v942
    %v1055 = vmul.f32 %v831, %v943
    %v1056 = vmul.f32 %v832, %v944
    %v1057 = vmul.f32 %v833, %v945
    %v1058 = vmul.f32 %v834, %v946
    %v1059 = vmul.f32 %v835, %v947
    %v1060 = vmul.f32 %v836, %v948
    %v1061 = vmul.f32 %v837, %v949
    %v1062 = vmul.f32 %v838, %v950
    %v1063 = vmul.f32 %v839, %v951
    %v1064 = vmul.f32 %v840, %v952
    %v1065 = vmul.f32 %v841, %v953
    %v1066 = vmul.f32 %v842, %v954
    %v1067 = vmul.f32 %v843, %v955
    %v1068 = vmul.f32 %v844, %v956
    %v1069 = vmul.f32 %v845, %v957
    %v1070 = vmul.f32 %v846, %v958
    %v1071 = vmul.f32 %v847, %v959
    %v1072 = vmul.f32 %v848, %v960
    %v1073 = vmul.f32 %v849, %v961
    %v1074 = vmul.f32 %v850, %v962
    %v1075 = vmul.f32 %v851, %v963
    %v1076 = vmul.f32 %v852, %v964
    %v1077 = vmul.f32 %v853, %v965
    %v1078 = vmul.f32 %v854, %v966
    %v1079 = vmul.f32 %v855, %v967
    %v1080 = vmul.f32 %v856, %v968
    %v1081 = vmul.f32 %v857, %v969
    %v1082 = vmul.f32 %v858, %v970
    %v1083 = vmul.f32 %v859, %v971
    %v1084 = vmul.f32 %v860, %v972
    %v1085 = vmul.f32 %v861, %v973
    %v1086 = vmul.f32 %v862, %v974
    %v1087 = vmul.f32 %v863, %v975
    %v1088 = vmul.f32 %v864, %v976
    %v1089 = vmul.f32 %v865, %v977
    %v1090 = vmul.f32 %v866, %v978
    %v1091 = vmul.f32 %v867, %v979
    %v1092 = vmul.f32 %v868, %v980
    %v1093 = vmul.f32 %v869, %v981
    %v1094 = vmul.f32 %v870, %v982
    %v1095 = vmul.f32 %v871, %v983
    %v1096 = vmul.f32 %v872, %v984
    %v1097 = vmul.f32 %v873, %v985
    %v1098 = vmul.f32 %v874, %v986
    %v1099 = vmul.f32 %v875, %v987
    %v1100 = vmul.f32 %v876, %v988
    %v1101 = vmul.f32 %v877, %v989
    %v1102 = vmul.f32 %v878, %v990
    %v1103 = vmul.f32 %v879, %v991
    %v1104 = vmul.f32 %v880, %v992
    %v1105 = vmul.f32 %v881, %v993
    %v1106 = vmul.f32 %v882, %v994
    %v1107 = vmul.f32 %v883, %v995
    %v1108 = vmul.f32 %v884, %v996
    %v1109 = vmul.f32 %v885, %v997
    %v1110 = vmul.f32 %v886, %v998
    %v1111 = vmul.f32 %v887, %v999
    %v1112 = vmul.f32 %v888, %v1000
    %v1113 = vmul.f32 %v889, %v1001
    %v1114 = vmul.f32 %v890, %v1002
    %v1115 = vmul.f32 %v891, %v1003
    %v1117 = vsel %vm355, %v1100, 0
    %v1120 = vsel %vm355, %v1101, 0
    %v1123 = vsel %vm355, %v1102, 0
    %v1126 = vsel %vm355, %v1103, 0
    %v1129 = vsel %vm355, %v1104, 0
    %v1132 = vsel %vm355, %v1105, 0
    %v1135 = vsel %vm355, %v1106, 0
    %v1138 = vsel %vm355, %v1107, 0
    %v1141 = vsel %vm355, %v1108, 0
    %v1144 = vsel %vm355, %v1109, 0
    %v1147 = vsel %vm355, %v1110, 0
    %v1150 = vsel %vm355, %v1111, 0
    %v1153 = vsel %vm355, %v1112, 0
    %v1156 = vsel %vm355, %v1113, 0
    %v1159 = vsel %vm355, %v1114, 0
    %v1162 = vsel %vm355, %v1115, 0
    %1164 = vmatpush.msra.mxu0 0.0
    %1165 = vmatpush.msra.mxu0 0.0
    %1166 = vmatpush.msra.mxu0 0.0
    %1167 = vmatpush.msra.mxu0 0.0
    %1168 = vmatpush.msra.mxu0 0.0
    %1169 = vmatpush.msra.mxu0 0.0
    %1170 = vmatpush.msra.mxu0 0.0
    %1171 = vmatpush.msra.mxu0 0.0
    %1172 = vmatpush.msra.mxu0 0.0
    %1173 = vmatpush.msra.mxu0 %v1117
    %1174 = vmatpush.msra.mxu0 %v1084
    %1175 = vmatpush.msra.mxu0 %v1068
    %1176 = vmatpush.msra.mxu0 %v1052
    %1177 = vmatpush.msra.mxu0 %v1036
    %1178 = vmatpush.msra.mxu0 %v1020
    %1179 = vmatpush.msra.mxu0 %v1004
    %1180 = vmatmul.f32.gmra.mxu0 %v353
    %v1181 = vpop.f32.mrf.mxu0
    %v1182 = vadd.f32 0.0, %v1181
    %1183 = vdwg.mxu0
    %1184 = vmatpush.msra.mxu0 0.0
    %1185 = vmatpush.msra.mxu0 0.0
    %1186 = vmatpush.msra.mxu0 0.0
    %1187 = vmatpush.msra.mxu0 0.0
    %1188 = vmatpush.msra.mxu0 0.0
    %1189 = vmatpush.msra.mxu0 0.0
    %1190 = vmatpush.msra.mxu0 0.0
    %1191 = vmatpush.msra.mxu0 0.0
    %1192 = vmatpush.msra.mxu0 0.0
    %1193 = vmatpush.msra.mxu0 %v1120
    %1194 = vmatpush.msra.mxu0 %v1085
    %1195 = vmatpush.msra.mxu0 %v1069
    %1196 = vmatpush.msra.mxu0 %v1053
    %1197 = vmatpush.msra.mxu0 %v1037
    %1198 = vmatpush.msra.mxu0 %v1021
    %1199 = vmatpush.msra.mxu0 %v1005
    %1200 = vmatmul.f32.gmra.mxu0 %v353
    %v1201 = vpop.f32.mrf.mxu0
    %v1202 = vadd.f32 0.0, %v1201
    %1203 = vdwg.mxu0
    %1204 = vmatpush.msra.mxu0 0.0
    %1205 = vmatpush.msra.mxu0 0.0
    %1206 = vmatpush.msra.mxu0 0.0
    %1207 = vmatpush.msra.mxu0 0.0
    %1208 = vmatpush.msra.mxu0 0.0
    %1209 = vmatpush.msra.mxu0 0.0
    %1210 = vmatpush.msra.mxu0 0.0
    %1211 = vmatpush.msra.mxu0 0.0
    %1212 = vmatpush.msra.mxu0 0.0
    %1213 = vmatpush.msra.mxu0 %v1123
    %1214 = vmatpush.msra.mxu0 %v1086
    %1215 = vmatpush.msra.mxu0 %v1070
    %1216 = vmatpush.msra.mxu0 %v1054
    %1217 = vmatpush.msra.mxu0 %v1038
    %1218 = vmatpush.msra.mxu0 %v1022
    %1219 = vmatpush.msra.mxu0 %v1006
    %1220 = vmatmul.f32.gmra.mxu0 %v353
    %v1221 = vpop.f32.mrf.mxu0
    %v1222 = vadd.f32 0.0, %v1221
    %1223 = vdwg.mxu0
    %1224 = vmatpush.msra.mxu0 0.0
    %1225 = vmatpush.msra.mxu0 0.0
    %1226 = vmatpush.msra.mxu0 0.0
    %1227 = vmatpush.msra.mxu0 0.0
    %1228 = vmatpush.msra.mxu0 0.0
    %1229 = vmatpush.msra.mxu0 0.0
    %1230 = vmatpush.msra.mxu0 0.0
    %1231 = vmatpush.msra.mxu0 0.0
    %1232 = vmatpush.msra.mxu0 0.0
    %1233 = vmatpush.msra.mxu0 %v1126
    %1234 = vmatpush.msra.mxu0 %v1087
    %1235 = vmatpush.msra.mxu0 %v1071
    %1236 = vmatpush.msra.mxu0 %v1055
    %1237 = vmatpush.msra.mxu0 %v1039
    %1238 = vmatpush.msra.mxu0 %v1023
    %1239 = vmatpush.msra.mxu0 %v1007
    %1240 = vmatmul.f32.gmra.mxu0 %v353
    %v1241 = vpop.f32.mrf.mxu0
    %v1242 = vadd.f32 0.0, %v1241
    %1243 = vdwg.mxu0
    %1244 = vmatpush.msra.mxu0 0.0
    %1245 = vmatpush.msra.mxu0 0.0
    %1246 = vmatpush.msra.mxu0 0.0
    %1247 = vmatpush.msra.mxu0 0.0
    %1248 = vmatpush.msra.mxu0 0.0
    %1249 = vmatpush.msra.mxu0 0.0
    %1250 = vmatpush.msra.mxu0 0.0
    %1251 = vmatpush.msra.mxu0 0.0
    %1252 = vmatpush.msra.mxu0 0.0
    %1253 = vmatpush.msra.mxu0 %v1129
    %1254 = vmatpush.msra.mxu0 %v1088
    %1255 = vmatpush.msra.mxu0 %v1072
    %1256 = vmatpush.msra.mxu0 %v1056
    %1257 = vmatpush.msra.mxu0 %v1040
    %1258 = vmatpush.msra.mxu0 %v1024
    %1259 = vmatpush.msra.mxu0 %v1008
    %1260 = vmatmul.f32.gmra.mxu0 %v353
    %v1261 = vpop.f32.mrf.mxu0
    %v1262 = vadd.f32 0.0, %v1261
    %1263 = vdwg.mxu0
    %1264 = vmatpush.msra.mxu0 0.0
    %1265 = vmatpush.msra.mxu0 0.0
    %1266 = vmatpush.msra.mxu0 0.0
    %1267 = vmatpush.msra.mxu0 0.0
    %1268 = vmatpush.msra.mxu0 0.0
    %1269 = vmatpush.msra.mxu0 0.0
    %1270 = vmatpush.msra.mxu0 0.0
    %1271 = vmatpush.msra.mxu0 0.0
    %1272 = vmatpush.msra.mxu0 0.0
    %1273 = vmatpush.msra.mxu0 %v1132
    %1274 = vmatpush.msra.mxu0 %v1089
    %1275 = vmatpush.msra.mxu0 %v1073
    %1276 = vmatpush.msra.mxu0 %v1057
    %1277 = vmatpush.msra.mxu0 %v1041
    %1278 = vmatpush.msra.mxu0 %v1025
    %1279 = vmatpush.msra.mxu0 %v1009
    %1280 = vmatmul.f32.gmra.mxu0 %v353
    %v1281 = vpop.f32.mrf.mxu0
    %v1282 = vadd.f32 0.0, %v1281
    %1283 = vdwg.mxu0
    %1284 = vmatpush.msra.mxu0 0.0
    %1285 = vmatpush.msra.mxu0 0.0
    %1286 = vmatpush.msra.mxu0 0.0
    %1287 = vmatpush.msra.mxu0 0.0
    %1288 = vmatpush.msra.mxu0 0.0
    %1289 = vmatpush.msra.mxu0 0.0
    %1290 = vmatpush.msra.mxu0 0.0
    %1291 = vmatpush.msra.mxu0 0.0
    %1292 = vmatpush.msra.mxu0 0.0
    %1293 = vmatpush.msra.mxu0 %v1135
    %1294 = vmatpush.msra.mxu0 %v1090
    %1295 = vmatpush.msra.mxu0 %v1074
    %1296 = vmatpush.msra.mxu0 %v1058
    %1297 = vmatpush.msra.mxu0 %v1042
    %1298 = vmatpush.msra.mxu0 %v1026
    %1299 = vmatpush.msra.mxu0 %v1010
    %1300 = vmatmul.f32.gmra.mxu0 %v353
    %v1301 = vpop.f32.mrf.mxu0
    %v1302 = vadd.f32 0.0, %v1301
    %1303 = vdwg.mxu0
    %1304 = vmatpush.msra.mxu0 0.0
    %1305 = vmatpush.msra.mxu0 0.0
    %1306 = vmatpush.msra.mxu0 0.0
    %1307 = vmatpush.msra.mxu0 0.0
    %1308 = vmatpush.msra.mxu0 0.0
    %1309 = vmatpush.msra.mxu0 0.0
    %1310 = vmatpush.msra.mxu0 0.0
    %1311 = vmatpush.msra.mxu0 0.0
    %1312 = vmatpush.msra.mxu0 0.0
    %1313 = vmatpush.msra.mxu0 %v1138
    %1314 = vmatpush.msra.mxu0 %v1091
    %1315 = vmatpush.msra.mxu0 %v1075
    %1316 = vmatpush.msra.mxu0 %v1059
    %1317 = vmatpush.msra.mxu0 %v1043
    %1318 = vmatpush.msra.mxu0 %v1027
    %1319 = vmatpush.msra.mxu0 %v1011
    %1320 = vmatmul.f32.gmra.mxu0 %v353
    %v1321 = vpop.f32.mrf.mxu0
    %v1322 = vadd.f32 0.0, %v1321
    %1323 = vdwg.mxu0
    %1324 = vmatpush.msra.mxu0 0.0
    %1325 = vmatpush.msra.mxu0 0.0
    %1326 = vmatpush.msra.mxu0 0.0
    %1327 = vmatpush.msra.mxu0 0.0
    %1328 = vmatpush.msra.mxu0 0.0
    %1329 = vmatpush.msra.mxu0 0.0
    %1330 = vmatpush.msra.mxu0 0.0
    %1331 = vmatpush.msra.mxu0 0.0
    %1332 = vmatpush.msra.mxu0 0.0
    %1333 = vmatpush.msra.mxu0 %v1141
    %1334 = vmatpush.msra.mxu0 %v1092
    %1335 = vmatpush.msra.mxu0 %v1076
    %1336 = vmatpush.msra.mxu0 %v1060
    %1337 = vmatpush.msra.mxu0 %v1044
    %1338 = vmatpush.msra.mxu0 %v1028
    %1339 = vmatpush.msra.mxu0 %v1012
    %1340 = vmatmul.f32.gmra.mxu0 %v353
    %v1341 = vpop.f32.mrf.mxu0
    %v1342 = vadd.f32 0.0, %v1341
    %1343 = vdwg.mxu0
    %1344 = vmatpush.msra.mxu0 0.0
    %1345 = vmatpush.msra.mxu0 0.0
    %1346 = vmatpush.msra.mxu0 0.0
    %1347 = vmatpush.msra.mxu0 0.0
    %1348 = vmatpush.msra.mxu0 0.0
    %1349 = vmatpush.msra.mxu0 0.0
    %1350 = vmatpush.msra.mxu0 0.0
    %1351 = vmatpush.msra.mxu0 0.0
    %1352 = vmatpush.msra.mxu0 0.0
    %1353 = vmatpush.msra.mxu0 %v1144
    %1354 = vmatpush.msra.mxu0 %v1093
    %1355 = vmatpush.msra.mxu0 %v1077
    %1356 = vmatpush.msra.mxu0 %v1061
    %1357 = vmatpush.msra.mxu0 %v1045
    %1358 = vmatpush.msra.mxu0 %v1029
    %1359 = vmatpush.msra.mxu0 %v1013
    %1360 = vmatmul.f32.gmra.mxu0 %v353
    %v1361 = vpop.f32.mrf.mxu0
    %v1362 = vadd.f32 0.0, %v1361
    %1363 = vdwg.mxu0
    %1364 = vmatpush.msra.mxu0 0.0
    %1365 = vmatpush.msra.mxu0 0.0
    %1366 = vmatpush.msra.mxu0 0.0
    %1367 = vmatpush.msra.mxu0 0.0
    %1368 = vmatpush.msra.mxu0 0.0
    %1369 = vmatpush.msra.mxu0 0.0
    %1370 = vmatpush.msra.mxu0 0.0
    %1371 = vmatpush.msra.mxu0 0.0
    %1372 = vmatpush.msra.mxu0 0.0
    %1373 = vmatpush.msra.mxu0 %v1147
    %1374 = vmatpush.msra.mxu0 %v1094
    %1375 = vmatpush.msra.mxu0 %v1078
    %1376 = vmatpush.msra.mxu0 %v1062
    %1377 = vmatpush.msra.mxu0 %v1046
    %1378 = vmatpush.msra.mxu0 %v1030
    %1379 = vmatpush.msra.mxu0 %v1014
    %1380 = vmatmul.f32.gmra.mxu0 %v353
    %v1381 = vpop.f32.mrf.mxu0
    %v1382 = vadd.f32 0.0, %v1381
    %1383 = vdwg.mxu0
    %1384 = vmatpush.msra.mxu0 0.0
    %1385 = vmatpush.msra.mxu0 0.0
    %1386 = vmatpush.msra.mxu0 0.0
    %1387 = vmatpush.msra.mxu0 0.0
    %1388 = vmatpush.msra.mxu0 0.0
    %1389 = vmatpush.msra.mxu0 0.0
    %1390 = vmatpush.msra.mxu0 0.0
    %1391 = vmatpush.msra.mxu0 0.0
    %1392 = vmatpush.msra.mxu0 0.0
    %1393 = vmatpush.msra.mxu0 %v1150
    %1394 = vmatpush.msra.mxu0 %v1095
    %1395 = vmatpush.msra.mxu0 %v1079
    %1396 = vmatpush.msra.mxu0 %v1063
    %1397 = vmatpush.msra.mxu0 %v1047
    %1398 = vmatpush.msra.mxu0 %v1031
    %1399 = vmatpush.msra.mxu0 %v1015
    %1400 = vmatmul.f32.gmra.mxu0 %v353
    %v1401 = vpop.f32.mrf.mxu0
    %v1402 = vadd.f32 0.0, %v1401
    %1403 = vdwg.mxu0
    %1404 = vmatpush.msra.mxu0 0.0
    %1405 = vmatpush.msra.mxu0 0.0
    %1406 = vmatpush.msra.mxu0 0.0
    %1407 = vmatpush.msra.mxu0 0.0
    %1408 = vmatpush.msra.mxu0 0.0
    %1409 = vmatpush.msra.mxu0 0.0
    %1410 = vmatpush.msra.mxu0 0.0
    %1411 = vmatpush.msra.mxu0 0.0
    %1412 = vmatpush.msra.mxu0 0.0
    %1413 = vmatpush.msra.mxu0 %v1153
    %1414 = vmatpush.msra.mxu0 %v1096
    %1415 = vmatpush.msra.mxu0 %v1080
    %1416 = vmatpush.msra.mxu0 %v1064
    %1417 = vmatpush.msra.mxu0 %v1048
    %1418 = vmatpush.msra.mxu0 %v1032
    %1419 = vmatpush.msra.mxu0 %v1016
    %1420 = vmatmul.f32.gmra.mxu0 %v353
    %v1421 = vpop.f32.mrf.mxu0
    %v1422 = vadd.f32 0.0, %v1421
    %1423 = vdwg.mxu0
    %1424 = vmatpush.msra.mxu0 0.0
    %1425 = vmatpush.msra.mxu0 0.0
    %1426 = vmatpush.msra.mxu0 0.0
    %1427 = vmatpush.msra.mxu0 0.0
    %1428 = vmatpush.msra.mxu0 0.0
    %1429 = vmatpush.msra.mxu0 0.0
    %1430 = vmatpush.msra.mxu0 0.0
    %1431 = vmatpush.msra.mxu0 0.0
    %1432 = vmatpush.msra.mxu0 0.0
    %1433 = vmatpush.msra.mxu0 %v1156
    %1434 = vmatpush.msra.mxu0 %v1097
    %1435 = vmatpush.msra.mxu0 %v1081
    %1436 = vmatpush.msra.mxu0 %v1065
    %1437 = vmatpush.msra.mxu0 %v1049
    %1438 = vmatpush.msra.mxu0 %v1033
    %1439 = vmatpush.msra.mxu0 %v1017
    %1440 = vmatmul.f32.gmra.mxu0 %v353
    %v1441 = vpop.f32.mrf.mxu0
    %v1442 = vadd.f32 0.0, %v1441
    %1443 = vdwg.mxu0
    %1444 = vmatpush.msra.mxu0 0.0
    %1445 = vmatpush.msra.mxu0 0.0
    %1446 = vmatpush.msra.mxu0 0.0
    %1447 = vmatpush.msra.mxu0 0.0
    %1448 = vmatpush.msra.mxu0 0.0
    %1449 = vmatpush.msra.mxu0 0.0
    %1450 = vmatpush.msra.mxu0 0.0
    %1451 = vmatpush.msra.mxu0 0.0
    %1452 = vmatpush.msra.mxu0 0.0
    %1453 = vmatpush.msra.mxu0 %v1159
    %1454 = vmatpush.msra.mxu0 %v1098
    %1455 = vmatpush.msra.mxu0 %v1082
    %1456 = vmatpush.msra.mxu0 %v1066
    %1457 = vmatpush.msra.mxu0 %v1050
    %1458 = vmatpush.msra.mxu0 %v1034
    %1459 = vmatpush.msra.mxu0 %v1018
    %1460 = vmatmul.f32.gmra.mxu0 %v353
    %v1461 = vpop.f32.mrf.mxu0
    %v1462 = vadd.f32 0.0, %v1461
    %1463 = vdwg.mxu0
    %1464 = vmatpush.msra.mxu0 0.0
    %1465 = vmatpush.msra.mxu0 0.0
    %1466 = vmatpush.msra.mxu0 0.0
    %1467 = vmatpush.msra.mxu0 0.0
    %1468 = vmatpush.msra.mxu0 0.0
    %1469 = vmatpush.msra.mxu0 0.0
    %1470 = vmatpush.msra.mxu0 0.0
    %1471 = vmatpush.msra.mxu0 0.0
    %1472 = vmatpush.msra.mxu0 0.0
    %1473 = vmatpush.msra.mxu0 %v1162
    %1474 = vmatpush.msra.mxu0 %v1099
    %1475 = vmatpush.msra.mxu0 %v1083
    %1476 = vmatpush.msra.mxu0 %v1067
    %1477 = vmatpush.msra.mxu0 %v1051
    %1478 = vmatpush.msra.mxu0 %v1035
    %1479 = vmatpush.msra.mxu0 %v1019
    %1480 = vmatmul.f32.gmra.mxu0 %v353
    %v1481 = vpop.f32.mrf.mxu0
    %v1482 = vadd.f32 0.0, %v1481
    %1483 = vdwg.mxu0
    %v1500 = vrot.slane %v1202, 7
    %v1501 = vrot.slane %v1222, 6
    %v1502 = vrot.slane %v1242, 5
    %v1503 = vrot.slane %v1262, 4
    %v1504 = vrot.slane %v1282, 3
    %v1505 = vrot.slane %v1302, 2
    %v1506 = vrot.slane %v1322, 1
    %v1507 = vrot.slane %v1362, 7
    %v1508 = vrot.slane %v1382, 6
    %v1509 = vrot.slane %v1402, 5
    %v1510 = vrot.slane %v1422, 4
    %v1511 = vrot.slane %v1442, 3
    %v1512 = vrot.slane %v1462, 2
    %v1513 = vrot.slane %v1482, 1
    %v1514 = vsel %vm355, %v1182, %v1500
    %v1515 = vsel %vm755, %v1501, %v1502
    %v1516 = vsel %vm757, %v1514, %v1515
    %v1517 = vsel %vm759, %v1503, %v1504
    %v1518 = vsel %vm761, %v1505, %v1506
    %v1519 = vsel %vm763, %v1517, %v1518
    %v1520 = vsel %vm765, %v1516, %v1519
    %v1521 = vsel %vm355, %v1342, %v1507
    %v1522 = vsel %vm755, %v1508, %v1509
    %v1523 = vsel %vm757, %v1521, %v1522
    %v1524 = vsel %vm759, %v1510, %v1511
    %v1525 = vsel %vm761, %v1512, %v1513
    %v1526 = vsel %vm763, %v1524, %v1525
    %v1527 = vsel %vm765, %v1523, %v1526
    %s1530 = scalar_lea.vmem [#allocation2], 1
    %1531 = vst [vmem:[%s1530] ss:$2 sm:$0xff] %v1520
    %s1532 = scalar_lea.vmem [#allocation2], 17
    %1533 = vst [vmem:[%s1532] ss:$2 sm:$0xff] %v1527
    %v1534 = vld [vmem:[#allocation2] sm:$0xff]
    %v1535 = vld [vmem:[#allocation2 + $0x8] sm:$0xff]
    %v1536 = vld [vmem:[#allocation2 + $0x10] sm:$0xff]
    %v1537 = vld [vmem:[#allocation2 + $0x18] sm:$0xff]
    %v1538 = vld [vmem:[%s2] sm:$0xff]
    %v1539 = vld [vmem:[%s2 + $0x8] sm:$0xff]
    %v1542 = vperm.slane %v1538, 0
    %v1543 = vperm.slane %v1538, 1
    %v1544 = vperm.slane %v1538, 2
    %v1545 = vperm.slane %v1538, 3
    %v1546 = vperm.slane %v1538, 4
    %v1547 = vperm.slane %v1538, 5
    %v1548 = vperm.slane %v1538, 6
    %v1549 = vperm.slane %v1538, 7
    %v1550 = vperm.slane %v1539, 0
    %v1551 = vperm.slane %v1539, 1
    %v1552 = vperm.slane %v1539, 2
    %v1553 = vperm.slane %v1539, 3
    %v1554 = vperm.slane %v1539, 4
    %v1555 = vperm.slane %v1539, 5
    %v1556 = vperm.slane %v1539, 6
    %v1557 = vperm.slane %v1539, 7
    %v1558 = vrot.slane %v1543, 6
    %v1559 = vrot.slane %v1544, 4
    %v1560 = vrot.slane %v1545, 2
    %v1561 = vrot.slane %v1547, 6
    %v1562 = vrot.slane %v1548, 4
    %v1563 = vrot.slane %v1549, 2
    %v1564 = vrot.slane %v1551, 6
    %v1565 = vrot.slane %v1552, 4
    %v1566 = vrot.slane %v1553, 2
    %v1567 = vrot.slane %v1555, 6
    %v1568 = vrot.slane %v1556, 4
    %v1569 = vrot.slane %v1557, 2
    %v1570 = vsel %vm757, %v1542, %v1558
    %v1571 = vsel %vm763, %v1559, %v1560
    %v1572 = vsel %vm765, %v1570, %v1571
    %v1573 = vsel %vm757, %v1546, %v1561
    %v1574 = vsel %vm763, %v1562, %v1563
    %v1575 = vsel %vm765, %v1573, %v1574
    %v1576 = vsel %vm757, %v1550, %v1564
    %v1577 = vsel %vm763, %v1565, %v1566
    %v1578 = vsel %vm765, %v1576, %v1577
    %v1579 = vsel %vm757, %v1554, %v1567
    %v1580 = vsel %vm763, %v1568, %v1569
    %v1581 = vsel %vm765, %v1579, %v1580
    %v1586 = vpow.f32 %v1534, %v1572
    %v1587 = vpow.f32 %v1535, %v1575
    %v1588 = vpow.f32 %v1536, %v1578
    %v1589 = vpow.f32 %v1537, %v1581
    %1590 = vst [vmem:[#allocation3] sm:$0xff] %v1586
    %1591 = vst [vmem:[#allocation3 + $0x8] sm:$0xff] %v1587
    %1592 = vst [vmem:[#allocation3 + $0x10] sm:$0xff] %v1588
    %1593 = vst [vmem:[#allocation3 + $0x18] sm:$0xff] %v1589
    // Predicated region
    $region14: #{tpu_custom_call.1} parent=1 // pred_check
      _
    $region15: #{tpu_custom_call.1} parent=1 // pred_check_branch
      %1595 = sbr.rel (0) target = $region17
    $region16: #{tpu_custom_call.1} parent=1 // pred_region
      %1597 = vsyncadd [#allocation4], 0
      %s1599 = sshll.u32 [#allocation3], 4
      %s1600 = int_to_ptr.vmem [resolvable:$true] %s1599
      %s1601 = sshll.u32 %s3, 4
      %s1602 = int_to_ptr.hbm [resolvable:$true] %s1601
      %1604 = dma.vmem_to_hbm [thread:$0]  %s1600, 512, %s1602, [#allocation4]
    $region17: #{tpu_custom_call.1} parent=1 // pred_fallthru
      _
    // Predicated region
    $region18: #{tpu_custom_call.1} parent=1 // pred_check
      _
    $region19: #{tpu_custom_call.1} parent=1 // pred_check_branch
      %1606 = sbr.rel (0) target = $region21
    $region20: #{tpu_custom_call.1} parent=1 // pred_region
      %1608 = dma.done [#allocation4], 512
    $region21: #{tpu_custom_call.1} parent=1 // pred_fallthru
      _
    %1609 = vsyncpa [#allocation4], 1

</llo_original>
